<compile_context>
chip_gen: v7x
topology: tpu7x:2x2x1
jax: 0.10.0
libtpu: 0.0.40
codegen_flags: <defaults>
</compile_context>

<pallas_src>
import jax
import jax.numpy as jnp
import numpy as np
from jax.experimental import pallas as pl
from jax.experimental.pallas import tpu as pltpu


# ---------------------------------------------------------------------------
# Kernel helpers
# ---------------------------------------------------------------------------
def _stage_kw_windows(win_ref, rows, W, C):
    """win_ref[i, w, kw*C:(kw+1)*C] <- rows[i, w + kw - 1, :], zero outside [0, W).

    Stages the three column(kw)-shifted copies of `rows` side by side on the lane
    axis so each 3x3-conv kernel row becomes ONE MXU dot with contraction depth
    3*C, and only two of the staging stores per conv are sublane-shifted.
    """
    n = rows.shape[0]
    zcol = jnp.zeros((n, 1, C), win_ref.dtype)
    win_ref[:, :, C:2 * C] = rows                        # kw = 1 (aligned store)
    win_ref[:, 1:W, 0:C] = rows[:, 0:W - 1, :]           # kw = 0 (left zero column)
    win_ref[:, 0:1, 0:C] = zcol
    win_ref[:, 0:W - 1, 2 * C:3 * C] = rows[:, 1:W, :]   # kw = 2 (right zero column)
    win_ref[:, W - 1:W, 2 * C:3 * C] = zcol


def _conv3x3_from_windows(win_ref, w_ref, n_rows, W, C):
    """(n_rows, W, C) f32 = sum_kh  win_ref[kh:kh+n_rows] @ w_ref[kh]   (K = 3*C)."""
    acc = None
    for kh in range(3):
        lhs = win_ref[kh:kh + n_rows].reshape(n_rows * W, 3 * C)
        z = jnp.dot(lhs, w_ref[kh], preferred_element_type=jnp.float32)
        acc = z if acc is None else acc + z
    return acc.reshape(n_rows, W, C)


# ---------------------------------------------------------------------------
# Kernel
# ---------------------------------------------------------------------------
def basic_block_kernel(x_ref, w1_ref, b1_ref, w2_ref, b2_ref, out_ref,
                       xh_ref, win1_ref, win2_ref):
    """Fused conv3x3 -> BN -> ReLU -> conv3x3 -> BN -> +residual -> ReLU.

    Grid: (batch, H row strips).  One SH-row output strip per step.

    x_ref:    (1, H, W, C)    bf16 full input image (resident across its strips)
    w*_ref:   (3, 3*C, C)     bf16 conv weights, BN scale pre-folded,
                              layout [kh, kw*C + ci, co]
    b*_ref:   (1, 1, C)       f32 folded BN bias
    out_ref:  (1, SH, W, C)   bf16 output strip
    xh_ref:   (H+4, W, C)     bf16 scratch: image with 2 zero rows above/below
                              (persistent; filled once per image at s == 0)
    win1_ref: (SH+4, W, 3*C)  bf16 scratch: kw-staged windows for conv1
    win2_ref: (SH+2, W, 3*C)  bf16 scratch: kw-staged windows for conv2
    """
    _, SH, W, C = out_ref.shape
    H = xh_ref.shape[0] - 4
    s = pl.program_id(1)
    r0 = pl.multiple_of(s * SH, SH)          # first output row of this strip

    # Once per image: zero-row-padded bf16 copy shared by all of its strips
    # (covers both conv "same"-padding rows and the strip halo rows).
    @pl.when(s == 0)
    def _():
        zrows = jnp.zeros((2, W, C), xh_ref.dtype)
        xh_ref[0:2] = zrows
        xh_ref[H + 2:H + 4] = zrows
        xh_ref[2:H + 2] = x_ref[0]

    EXT = SH + 2                             # conv1 rows needed (1-row halo for conv2)

    # ---- conv1 -> +bias -> ReLU over the extended strip --------------------------
    xrows = xh_ref[pl.ds(r0, SH + 4)]        # zero-padded x rows r0-2 .. r0+SH+1
    _stage_kw_windows(win1_ref, xrows, W, C)
    out1 = _conv3x3_from_windows(win1_ref, w1_ref, EXT, W, C)
    out1 = jnp.maximum(out1 + b1_ref[...], 0.0).astype(jnp.bfloat16)

    # ---- conv2 -> +bias -> +residual -> ReLU over the strip ----------------------
    _stage_kw_windows(win2_ref, out1, W, C)

    # conv2's zero-padding rows are rows of *out1* outside the image; they must be 0
    # (not relu(bias1)), so overwrite the staged halo row at the image top/bottom.
    @pl.when(s == 0)
    def _():
        win2_ref[0:1] = jnp.zeros((1, W, 3 * C), win2_ref.dtype)

    @pl.when(s == pl.num_programs(1) - 1)
    def _():
        win2_ref[SH + 1:SH + 2] = jnp.zeros((1, W, 3 * C), win2_ref.dtype)

    out2 = _conv3x3_from_windows(win2_ref, w2_ref, SH, W, C)
    res = xh_ref[pl.ds(r0 + 2, SH)].astype(jnp.float32)       # residual = x strip
    out_ref[0] = jnp.maximum(out2 + b2_ref[...] + res, 0.0).astype(out_ref.dtype)


# ---------------------------------------------------------------------------
# Wrapper
# ---------------------------------------------------------------------------
def fold_bn(gamma, beta, mean, var, eps=1e-5):
    """Eval-mode BatchNorm folded to per-channel (scale, bias) in f32."""
    scale = (gamma / jnp.sqrt(var + eps)).astype(jnp.float32)
    bias = beta.astype(jnp.float32) - mean.astype(jnp.float32) * scale
    return scale, bias


def _pick_strip_rows(H):
    """A 'nice' divisor of H around 8-16 rows (ResNet H in {7,14,28,56,112,224})."""
    for cand in (8, 16, 7, 14, 4, 2):
        if cand <= H and H % cand == 0:
            return cand
    return H


def _padded_bytes(shape, itemsize, sublane):
    """VMEM footprint of an array after (sublane, 128)-lane tile padding."""
    lead = 1
    for d in shape[:-2]:
        lead *= int(d)
    s = -(-int(shape[-2]) // sublane) * sublane
    l = -(-int(shape[-1]) // 128) * 128
    return lead * s * l * itemsize


@jax.jit
def basic_block_forward(x_nchw, w1, bn1, w2, bn2):
    """x_nchw: (B, C, H, W) f32; w*: (3,3,Cin,Cout) HWIO; bn*: (gamma,beta,mean,var).

    Returns the BasicBlock output in NCHW, bf16 (the kernel emits bf16 to halve
    the HBM write stream; cast at the call site if f32 is required downstream).
    """
    x = jnp.transpose(x_nchw, (0, 2, 3, 1))            # NHWC: channels on lanes
    B, H, W, C = x.shape
    assert w1.shape == (3, 3, C, C) and w2.shape == (3, 3, C, C), \
        "BasicBlock with downsample=None requires inplanes == planes"

    # Fold BN: the scale goes into the conv weights (BN is linear); bias stays in-kernel.
    s1, b1 = fold_bn(*bn1)
    s2, b2 = fold_bn(*bn2)
    w1c = (w1 * s1.reshape(1, 1, 1, C)).astype(jnp.bfloat16).reshape(3, 3 * C, C)
    w2c = (w2 * s2.reshape(1, 1, 1, C)).astype(jnp.bfloat16).reshape(3, 3 * C, C)
    b1 = b1.reshape(1, 1, C)
    b2 = b2.reshape(1, 1, C)
    xb = x.astype(jnp.bfloat16)

    SH = _pick_strip_rows(H)
    n_strips = H // SH

    # Size the VMEM limit from the actual tile-padded working set (+headroom),
    # keeping it well inside v7x's 64 MiB physical VMEM.
    workset = (
        2 * _padded_bytes((1, H, W, C), 2, 16)          # input image (double-buffered)
        + 2 * _padded_bytes((1, SH, W, C), 2, 16)       # output strip (double-buffered)
        + 4 * _padded_bytes((3, 3 * C, C), 2, 16)       # 2 weight tensors x 2 buffers
        + 4 * _padded_bytes((1, 1, C), 4, 8)            # 2 biases x 2 buffers
        + _padded_bytes((H + 4, W, C), 2, 16)           # xh scratch
        + _padded_bytes((SH + 4, W, 3 * C), 2, 16)      # win1 scratch
        + _padded_bytes((SH + 2, W, 3 * C), 2, 16)      # win2 scratch
        + 3 * _padded_bytes((SH + 2, W, C), 4, 8)       # f32 value temps
    )
    vmem_limit = int(min(48 * 1024 * 1024, 4 * workset + 8 * 1024 * 1024))

    grid_spec = pltpu.PrefetchScalarGridSpec(
        num_scalar_prefetch=0,
        grid=(B, n_strips),                              # batch outer, row strips inner
        in_specs=[
            pl.BlockSpec((1, H, W, C), lambda b, s: (b, 0, 0, 0)),   # x, resident per image
            pl.BlockSpec((3, 3 * C, C), lambda b, s: (0, 0, 0)),     # w1 (BN1 scale folded)
            pl.BlockSpec((1, 1, C), lambda b, s: (0, 0, 0)),         # bn1 bias
            pl.BlockSpec((3, 3 * C, C), lambda b, s: (0, 0, 0)),     # w2 (BN2 scale folded)
            pl.BlockSpec((1, 1, C), lambda b, s: (0, 0, 0)),         # bn2 bias
        ],
        out_specs=pl.BlockSpec((1, SH, W, C), lambda b, s: (b, s, 0, 0)),
        scratch_shapes=[
            pltpu.VMEM((H + 4, W, C), jnp.bfloat16),        # row-padded image copy
            pltpu.VMEM((SH + 4, W, 3 * C), jnp.bfloat16),   # conv1 staged windows
            pltpu.VMEM((SH + 2, W, 3 * C), jnp.bfloat16),   # conv2 staged windows
        ],
    )

    out_nhwc = pl.pallas_call(
        basic_block_kernel,
        out_shape=jax.ShapeDtypeStruct((B, H, W, C), jnp.bfloat16),
        grid_spec=grid_spec,
        compiler_params=pltpu.CompilerParams(
            dimension_semantics=("parallel", "arbitrary"),  # batch across TCs; strips
                                                            # sequential per image
            vmem_limit_bytes=vmem_limit,
        ),
    )(xb, w1c, b1, w2c, b2)

    return jnp.transpose(out_nhwc, (0, 3, 1, 2))            # back to NCHW (bf16)


# ---------------------------------------------------------------------------
# Reference & test
# ---------------------------------------------------------------------------
def reference_forward(x_nchw, w1, bn1, w2, bn2):
    """Plain-JAX f32 reference (lax conv) for verification."""
    def conv(x, w):  # x NCHW, w HWIO
        return jax.lax.conv_general_dilated(
            x, w, window_strides=(1, 1), padding=((1, 1), (1, 1)),
            dimension_numbers=("NCHW", "HWIO", "NCHW"))

    def bn(x, p):
        g, b, m, v = p
        g, b, m, v = (a.reshape(1, -1, 1, 1) for a in (g, b, m, v))
        return (x - m) / jnp.sqrt(v + 1e-5) * g + b

    out = jax.nn.relu(bn(conv(x_nchw, w1), bn1))
    out = bn(conv(out, w2), bn2) + x_nchw
    return jax.nn.relu(out)


if __name__ == "__main__":
    key = jax.random.PRNGKey(0)
    B, C, H, W = 2, 4, 16, 16          # correctness-only shapes (inplanes=planes=4)

    ks = jax.random.split(key, 8)
    x = jax.random.normal(ks[0], (B, C, H, W), jnp.float32)

    # Deterministic synthetic parameters (HWIO conv weights, BN params).
    w1 = jax.random.normal(ks[1], (3, 3, C, C), jnp.float32) * 0.1
    w2 = jax.random.normal(ks[2], (3, 3, C, C), jnp.float32) * 0.1
    bn1 = (jax.random.normal(ks[3], (C,)) * 0.1 + 1.0,               # gamma
           jax.random.normal(ks[4], (C,)) * 0.1,                     # beta
           jax.random.normal(ks[5], (C,)) * 0.1,                     # running_mean
           jnp.abs(jax.random.normal(ks[6], (C,))) * 0.1 + 1.0)      # running_var
    bn2 = (jnp.ones((C,)), jnp.zeros((C,)), jnp.zeros((C,)),
           jnp.abs(jax.random.normal(ks[7], (C,))) * 0.1 + 1.0)

    out = jax.block_until_ready(basic_block_forward(x, w1, bn1, w2, bn2))
    ref = reference_forward(x, w1, bn1, w2, bn2)

    # bf16 activations/weights/output with f32 accumulation -> loose tolerance.
    np.testing.assert_allclose(np.asarray(out).astype(np.float32),
                               np.asarray(ref), rtol=2e-2, atol=3e-2)
    print("KERNEL_OK")
</pallas_src>

<mosaic_0001>
module attributes {stable_mosaic.version = 11 : i64} {
  func.func @basic_block_kernel(%arg0: i32, %arg1: i32, %arg2: memref<1x16x16x4xbf16, #tpu.memory_space<vmem>>, %arg3: memref<3x12x4xbf16, #tpu.memory_space<vmem>>, %arg4: memref<1x1x4xf32, #tpu.memory_space<vmem>>, %arg5: memref<3x12x4xbf16, #tpu.memory_space<vmem>>, %arg6: memref<1x1x4xf32, #tpu.memory_space<vmem>>, %arg7: memref<1x8x16x4xbf16, #tpu.memory_space<vmem>>, %arg8: memref<20x16x4xbf16, #tpu.memory_space<vmem>>, %arg9: memref<12x16x12xbf16, #tpu.memory_space<vmem>>, %arg10: memref<10x16x12xbf16, #tpu.memory_space<vmem>>) attributes {dimension_semantics = [#tpu.dimension_semantics<parallel>, #tpu.dimension_semantics<arbitrary>], iteration_bounds = array<i64: 2, 2>, scalar_prefetch = 0 : i64, scratch_operands = 3 : i64, tpu.core_type = #tpu.core_type<tc>, window_params = [{transform_indices = @transform_0, window_bounds = array<i64: 1, 16, 16, 4>}, {pipeline_mode = #tpu.pipeline_mode<synchronous>, transform_indices = @transform_1, window_bounds = array<i64: 3, 12, 4>}, {pipeline_mode = #tpu.pipeline_mode<synchronous>, transform_indices = @transform_2, window_bounds = array<i64: 1, 1, 4>}, {pipeline_mode = #tpu.pipeline_mode<synchronous>, transform_indices = @transform_3, window_bounds = array<i64: 3, 12, 4>}, {pipeline_mode = #tpu.pipeline_mode<synchronous>, transform_indices = @transform_4, window_bounds = array<i64: 1, 1, 4>}, {transform_indices = @transform_5, window_bounds = array<i64: 1, 8, 16, 4>}]} {
    %c8_i32 = arith.constant 8 : i32
    %0 = arith.muli %arg1, %c8_i32 : i32
    %1 = tpu.assume_multiple %0, 8 : i32
    %c0_i32 = arith.constant 0 : i32
    %2 = arith.cmpi eq, %arg1, %c0_i32 : i32
    %3 = arith.extui %2 : i1 to i32
    %c0_i32_0 = arith.constant 0 : i32
    %4 = arith.cmpi ne, %3, %c0_i32_0 : i32
    scf.if %4 {
      %cst_87 = arith.constant 0.000000e+00 : bf16
      %85 = vector.broadcast %cst_87 : bf16 to vector<2x16x4xbf16>
      %c0_88 = arith.constant 0 : index
      %c0_89 = arith.constant 0 : index
      %c0_90 = arith.constant 0 : index
      %86 = vector.load %arg8[%c0_88, %c0_89, %c0_90] : memref<20x16x4xbf16, #tpu.memory_space<vmem>>, vector<2x16x4xbf16>
      tpu.vector_store %arg8[%c0_88, %c0_89, %c0_90], %85 {strides = array<i32>} : memref<20x16x4xbf16, #tpu.memory_space<vmem>>, vector<2x16x4xbf16>,
      %c18 = arith.constant 18 : index
      %c0_91 = arith.constant 0 : index
      %c0_92 = arith.constant 0 : index
      %87 = vector.load %arg8[%c18, %c0_91, %c0_92] : memref<20x16x4xbf16, #tpu.memory_space<vmem>>, vector<2x16x4xbf16>
      tpu.vector_store %arg8[%c18, %c0_91, %c0_92], %85 {strides = array<i32>} : memref<20x16x4xbf16, #tpu.memory_space<vmem>>, vector<2x16x4xbf16>,
      %c0_93 = arith.constant 0 : index
      %c0_94 = arith.constant 0 : index
      %c0_95 = arith.constant 0 : index
      %c0_96 = arith.constant 0 : index
      %88 = vector.load %arg2[%c0_93, %c0_94, %c0_95, %c0_96] : memref<1x16x16x4xbf16, #tpu.memory_space<vmem>>, vector<1x16x16x4xbf16>
      %89 = vector.shape_cast %88 : vector<1x16x16x4xbf16> to vector<16x16x4xbf16>
      %c2_97 = arith.constant 2 : index
      %c0_98 = arith.constant 0 : index
      %c0_99 = arith.constant 0 : index
      %90 = vector.load %arg8[%c2_97, %c0_98, %c0_99] : memref<20x16x4xbf16, #tpu.memory_space<vmem>>, vector<16x16x4xbf16>
      tpu.vector_store %arg8[%c2_97, %c0_98, %c0_99], %89 {strides = array<i32>} : memref<20x16x4xbf16, #tpu.memory_space<vmem>>, vector<16x16x4xbf16>,
    } else {
    }
    %5 = arith.index_cast %1 : i32 to index
    %c0 = arith.constant 0 : index
    %c0_1 = arith.constant 0 : index
    %6 = vector.load %arg8[%5, %c0, %c0_1] : memref<20x16x4xbf16, #tpu.memory_space<vmem>>, vector<12x16x4xbf16>
    %cst = arith.constant 0.000000e+00 : bf16
    %7 = vector.broadcast %cst : bf16 to vector<12x1x4xbf16>
    %c0_2 = arith.constant 0 : index
    %c0_3 = arith.constant 0 : index
    %c4 = arith.constant 4 : index
    %8 = vector.load %arg9[%c0_2, %c0_3, %c4] : memref<12x16x12xbf16, #tpu.memory_space<vmem>>, vector<12x16x4xbf16>
    tpu.vector_store %arg9[%c0_2, %c0_3, %c4], %6 {strides = array<i32>} : memref<12x16x12xbf16, #tpu.memory_space<vmem>>, vector<12x16x4xbf16>,
    %9 = vector.extract_strided_slice %6 {offsets = [0, 0, 0], sizes = [12, 15, 4], strides = [1, 1, 1]} : vector<12x16x4xbf16> to vector<12x15x4xbf16>
    %c0_4 = arith.constant 0 : index
    %c1 = arith.constant 1 : index
    %c0_5 = arith.constant 0 : index
    %10 = vector.load %arg9[%c0_4, %c1, %c0_5] : memref<12x16x12xbf16, #tpu.memory_space<vmem>>, vector<12x15x4xbf16>
    tpu.vector_store %arg9[%c0_4, %c1, %c0_5], %9 {strides = array<i32>} : memref<12x16x12xbf16, #tpu.memory_space<vmem>>, vector<12x15x4xbf16>,
    %c0_6 = arith.constant 0 : index
    %c0_7 = arith.constant 0 : index
    %c0_8 = arith.constant 0 : index
    %11 = vector.load %arg9[%c0_6, %c0_7, %c0_8] : memref<12x16x12xbf16, #tpu.memory_space<vmem>>, vector<12x1x4xbf16>
    tpu.vector_store %arg9[%c0_6, %c0_7, %c0_8], %7 {strides = array<i32>} : memref<12x16x12xbf16, #tpu.memory_space<vmem>>, vector<12x1x4xbf16>,
    %12 = vector.extract_strided_slice %6 {offsets = [0, 1, 0], sizes = [12, 15, 4], strides = [1, 1, 1]} : vector<12x16x4xbf16> to vector<12x15x4xbf16>
    %c0_9 = arith.constant 0 : index
    %c0_10 = arith.constant 0 : index
    %c8 = arith.constant 8 : index
    %13 = vector.load %arg9[%c0_9, %c0_10, %c8] : memref<12x16x12xbf16, #tpu.memory_space<vmem>>, vector<12x15x4xbf16>
    tpu.vector_store %arg9[%c0_9, %c0_10, %c8], %12 {strides = array<i32>} : memref<12x16x12xbf16, #tpu.memory_space<vmem>>, vector<12x15x4xbf16>,
    %c0_11 = arith.constant 0 : index
    %c15 = arith.constant 15 : index
    %c8_12 = arith.constant 8 : index
    %14 = vector.load %arg9[%c0_11, %c15, %c8_12] : memref<12x16x12xbf16, #tpu.memory_space<vmem>>, vector<12x1x4xbf16>
    tpu.vector_store %arg9[%c0_11, %c15, %c8_12], %7 {strides = array<i32>} : memref<12x16x12xbf16, #tpu.memory_space<vmem>>, vector<12x1x4xbf16>,
    %c0_13 = arith.constant 0 : index
    %c0_14 = arith.constant 0 : index
    %c0_15 = arith.constant 0 : index
    %15 = vector.load %arg9[%c0_13, %c0_14, %c0_15] : memref<12x16x12xbf16, #tpu.memory_space<vmem>>, vector<10x16x12xbf16>
    %16 = vector.shape_cast %15 : vector<10x16x12xbf16> to vector<160x12xbf16>
    %c0_16 = arith.constant 0 : index
    %c0_17 = arith.constant 0 : index
    %c0_18 = arith.constant 0 : index
    %17 = vector.load %arg3[%c0_16, %c0_17, %c0_18] : memref<3x12x4xbf16, #tpu.memory_space<vmem>>, vector<1x12x4xbf16>
    %18 = vector.shape_cast %17 : vector<1x12x4xbf16> to vector<12x4xbf16>
    %cst_19 = arith.constant dense<0.000000e+00> : vector<160x4xf32>
    %19 = tpu.matmul %16, %18, %cst_19 {dimension_numbers = #tpu.dot_dimension_numbers<[1], [0], [0], [1], [0, 0, 1, 1], [], []>} : vector<160x12xbf16>, vector<12x4xbf16>, vector<160x4xf32> -> vector<160x4xf32>
    %c1_20 = arith.constant 1 : index
    %c0_21 = arith.constant 0 : index
    %c0_22 = arith.constant 0 : index
    %20 = vector.load %arg9[%c1_20, %c0_21, %c0_22] : memref<12x16x12xbf16, #tpu.memory_space<vmem>>, vector<10x16x12xbf16>
    %21 = vector.shape_cast %20 : vector<10x16x12xbf16> to vector<160x12xbf16>
    %c1_23 = arith.constant 1 : index
    %c0_24 = arith.constant 0 : index
    %c0_25 = arith.constant 0 : index
    %22 = vector.load %arg3[%c1_23, %c0_24, %c0_25] : memref<3x12x4xbf16, #tpu.memory_space<vmem>>, vector<1x12x4xbf16>
    %23 = vector.shape_cast %22 : vector<1x12x4xbf16> to vector<12x4xbf16>
    %cst_26 = arith.constant dense<0.000000e+00> : vector<160x4xf32>
    %24 = tpu.matmul %21, %23, %cst_26 {dimension_numbers = #tpu.dot_dimension_numbers<[1], [0], [0], [1], [0, 0, 1, 1], [], []>} : vector<160x12xbf16>, vector<12x4xbf16>, vector<160x4xf32> -> vector<160x4xf32>
    %25 = arith.addf %19, %24 : vector<160x4xf32>
    %c2 = arith.constant 2 : index
    %c0_27 = arith.constant 0 : index
    %c0_28 = arith.constant 0 : index
    %26 = vector.load %arg9[%c2, %c0_27, %c0_28] : memref<12x16x12xbf16, #tpu.memory_space<vmem>>, vector<10x16x12xbf16>
    %27 = vector.shape_cast %26 : vector<10x16x12xbf16> to vector<160x12xbf16>
    %c2_29 = arith.constant 2 : index
    %c0_30 = arith.constant 0 : index
    %c0_31 = arith.constant 0 : index
    %28 = vector.load %arg3[%c2_29, %c0_30, %c0_31] : memref<3x12x4xbf16, #tpu.memory_space<vmem>>, vector<1x12x4xbf16>
    %29 = vector.shape_cast %28 : vector<1x12x4xbf16> to vector<12x4xbf16>
    %cst_32 = arith.constant dense<0.000000e+00> : vector<160x4xf32>
    %30 = tpu.matmul %27, %29, %cst_32 {dimension_numbers = #tpu.dot_dimension_numbers<[1], [0], [0], [1], [0, 0, 1, 1], [], []>} : vector<160x12xbf16>, vector<12x4xbf16>, vector<160x4xf32> -> vector<160x4xf32>
    %31 = arith.addf %25, %30 : vector<160x4xf32>
    %32 = vector.shape_cast %31 : vector<160x4xf32> to vector<10x16x4xf32>
    %c0_33 = arith.constant 0 : index
    %c0_34 = arith.constant 0 : index
    %c0_35 = arith.constant 0 : index
    %33 = vector.load %arg4[%c0_33, %c0_34, %c0_35] : memref<1x1x4xf32, #tpu.memory_space<vmem>>, vector<1x1x4xf32>
    %34 = vector.broadcast %33 : vector<1x1x4xf32> to vector<10x16x4xf32>
    %35 = arith.addf %32, %34 : vector<10x16x4xf32>
    %cst_36 = arith.constant 0.000000e+00 : f32
    %36 = vector.broadcast %cst_36 : f32 to vector<10x16x4xf32>
    %37 = arith.maximumf %35, %36 : vector<10x16x4xf32>
    %38 = arith.truncf %37 : vector<10x16x4xf32> to vector<10x16x4xbf16>
    %cst_37 = arith.constant 0.000000e+00 : bf16
    %39 = vector.broadcast %cst_37 : bf16 to vector<10x1x4xbf16>
    %c0_38 = arith.constant 0 : index
    %c0_39 = arith.constant 0 : index
    %c4_40 = arith.constant 4 : index
    %40 = vector.load %arg10[%c0_38, %c0_39, %c4_40] : memref<10x16x12xbf16, #tpu.memory_space<vmem>>, vector<10x16x4xbf16>
    tpu.vector_store %arg10[%c0_38, %c0_39, %c4_40], %38 {strides = array<i32>} : memref<10x16x12xbf16, #tpu.memory_space<vmem>>, vector<10x16x4xbf16>,
    %41 = vector.extract_strided_slice %38 {offsets = [0, 0, 0], sizes = [10, 15, 4], strides = [1, 1, 1]} : vector<10x16x4xbf16> to vector<10x15x4xbf16>
    %c0_41 = arith.constant 0 : index
    %c1_42 = arith.constant 1 : index
    %c0_43 = arith.constant 0 : index
    %42 = vector.load %arg10[%c0_41, %c1_42, %c0_43] : memref<10x16x12xbf16, #tpu.memory_space<vmem>>, vector<10x15x4xbf16>
    tpu.vector_store %arg10[%c0_41, %c1_42, %c0_43], %41 {strides = array<i32>} : memref<10x16x12xbf16, #tpu.memory_space<vmem>>, vector<10x15x4xbf16>,
    %c0_44 = arith.constant 0 : index
    %c0_45 = arith.constant 0 : index
    %c0_46 = arith.constant 0 : index
    %43 = vector.load %arg10[%c0_44, %c0_45, %c0_46] : memref<10x16x12xbf16, #tpu.memory_space<vmem>>, vector<10x1x4xbf16>
    tpu.vector_store %arg10[%c0_44, %c0_45, %c0_46], %39 {strides = array<i32>} : memref<10x16x12xbf16, #tpu.memory_space<vmem>>, vector<10x1x4xbf16>,
    %44 = vector.extract_strided_slice %38 {offsets = [0, 1, 0], sizes = [10, 15, 4], strides = [1, 1, 1]} : vector<10x16x4xbf16> to vector<10x15x4xbf16>
    %c0_47 = arith.constant 0 : index
    %c0_48 = arith.constant 0 : index
    %c8_49 = arith.constant 8 : index
    %45 = vector.load %arg10[%c0_47, %c0_48, %c8_49] : memref<10x16x12xbf16, #tpu.memory_space<vmem>>, vector<10x15x4xbf16>
    tpu.vector_store %arg10[%c0_47, %c0_48, %c8_49], %44 {strides = array<i32>} : memref<10x16x12xbf16, #tpu.memory_space<vmem>>, vector<10x15x4xbf16>,
    %c0_50 = arith.constant 0 : index
    %c15_51 = arith.constant 15 : index
    %c8_52 = arith.constant 8 : index
    %46 = vector.load %arg10[%c0_50, %c15_51, %c8_52] : memref<10x16x12xbf16, #tpu.memory_space<vmem>>, vector<10x1x4xbf16>
    tpu.vector_store %arg10[%c0_50, %c15_51, %c8_52], %39 {strides = array<i32>} : memref<10x16x12xbf16, #tpu.memory_space<vmem>>, vector<10x1x4xbf16>,
    %c0_i32_53 = arith.constant 0 : i32
    %47 = arith.cmpi eq, %arg1, %c0_i32_53 : i32
    %48 = arith.extui %47 : i1 to i32
    %c0_i32_54 = arith.constant 0 : i32
    %49 = arith.cmpi ne, %48, %c0_i32_54 : i32
    scf.if %49 {
      %cst_87 = arith.constant 0.000000e+00 : bf16
      %85 = vector.broadcast %cst_87 : bf16 to vector<1x16x12xbf16>
      %c0_88 = arith.constant 0 : index
      %c0_89 = arith.constant 0 : index
      %c0_90 = arith.constant 0 : index
      %86 = vector.load %arg10[%c0_88, %c0_89, %c0_90] : memref<10x16x12xbf16, #tpu.memory_space<vmem>>, vector<1x16x12xbf16>
      tpu.vector_store %arg10[%c0_88, %c0_89, %c0_90], %85 {strides = array<i32>} : memref<10x16x12xbf16, #tpu.memory_space<vmem>>, vector<1x16x12xbf16>,
    } else {
    }
    %c1_i32 = arith.constant 1 : i32
    %50 = arith.cmpi eq, %arg1, %c1_i32 : i32
    %51 = arith.extui %50 : i1 to i32
    %c0_i32_55 = arith.constant 0 : i32
    %52 = arith.cmpi ne, %51, %c0_i32_55 : i32
    scf.if %52 {
      %cst_87 = arith.constant 0.000000e+00 : bf16
      %85 = vector.broadcast %cst_87 : bf16 to vector<1x16x12xbf16>
      %c9 = arith.constant 9 : index
      %c0_88 = arith.constant 0 : index
      %c0_89 = arith.constant 0 : index
      %86 = vector.load %arg10[%c9, %c0_88, %c0_89] : memref<10x16x12xbf16, #tpu.memory_space<vmem>>, vector<1x16x12xbf16>
      tpu.vector_store %arg10[%c9, %c0_88, %c0_89], %85 {strides = array<i32>} : memref<10x16x12xbf16, #tpu.memory_space<vmem>>, vector<1x16x12xbf16>,
    } else {
    }
    %c0_56 = arith.constant 0 : index
    %c0_57 = arith.constant 0 : index
    %c0_58 = arith.constant 0 : index
    %53 = vector.load %arg10[%c0_56, %c0_57, %c0_58] : memref<10x16x12xbf16, #tpu.memory_space<vmem>>, vector<8x16x12xbf16>
    %54 = vector.shape_cast %53 : vector<8x16x12xbf16> to vector<128x12xbf16>
    %c0_59 = arith.constant 0 : index
    %c0_60 = arith.constant 0 : index
    %c0_61 = arith.constant 0 : index
    %55 = vector.load %arg5[%c0_59, %c0_60, %c0_61] : memref<3x12x4xbf16, #tpu.memory_space<vmem>>, vector<1x12x4xbf16>
    %56 = vector.shape_cast %55 : vector<1x12x4xbf16> to vector<12x4xbf16>
    %cst_62 = arith.constant dense<0.000000e+00> : vector<128x4xf32>
    %57 = tpu.matmul %54, %56, %cst_62 {dimension_numbers = #tpu.dot_dimension_numbers<[1], [0], [0], [1], [0, 0, 1, 1], [], []>} : vector<128x12xbf16>, vector<12x4xbf16>, vector<128x4xf32> -> vector<128x4xf32>
    %c1_63 = arith.constant 1 : index
    %c0_64 = arith.constant 0 : index
    %c0_65 = arith.constant 0 : index
    %58 = vector.load %arg10[%c1_63, %c0_64, %c0_65] : memref<10x16x12xbf16, #tpu.memory_space<vmem>>, vector<8x16x12xbf16>
    %59 = vector.shape_cast %58 : vector<8x16x12xbf16> to vector<128x12xbf16>
    %c1_66 = arith.constant 1 : index
    %c0_67 = arith.constant 0 : index
    %c0_68 = arith.constant 0 : index
    %60 = vector.load %arg5[%c1_66, %c0_67, %c0_68] : memref<3x12x4xbf16, #tpu.memory_space<vmem>>, vector<1x12x4xbf16>
    %61 = vector.shape_cast %60 : vector<1x12x4xbf16> to vector<12x4xbf16>
    %cst_69 = arith.constant dense<0.000000e+00> : vector<128x4xf32>
    %62 = tpu.matmul %59, %61, %cst_69 {dimension_numbers = #tpu.dot_dimension_numbers<[1], [0], [0], [1], [0, 0, 1, 1], [], []>} : vector<128x12xbf16>, vector<12x4xbf16>, vector<128x4xf32> -> vector<128x4xf32>
    %63 = arith.addf %57, %62 : vector<128x4xf32>
    %c2_70 = arith.constant 2 : index
    %c0_71 = arith.constant 0 : index
    %c0_72 = arith.constant 0 : index
    %64 = vector.load %arg10[%c2_70, %c0_71, %c0_72] : memref<10x16x12xbf16, #tpu.memory_space<vmem>>, vector<8x16x12xbf16>
    %65 = vector.shape_cast %64 : vector<8x16x12xbf16> to vector<128x12xbf16>
    %c2_73 = arith.constant 2 : index
    %c0_74 = arith.constant 0 : index
    %c0_75 = arith.constant 0 : index
    %66 = vector.load %arg5[%c2_73, %c0_74, %c0_75] : memref<3x12x4xbf16, #tpu.memory_space<vmem>>, vector<1x12x4xbf16>
    %67 = vector.shape_cast %66 : vector<1x12x4xbf16> to vector<12x4xbf16>
    %cst_76 = arith.constant dense<0.000000e+00> : vector<128x4xf32>
    %68 = tpu.matmul %65, %67, %cst_76 {dimension_numbers = #tpu.dot_dimension_numbers<[1], [0], [0], [1], [0, 0, 1, 1], [], []>} : vector<128x12xbf16>, vector<12x4xbf16>, vector<128x4xf32> -> vector<128x4xf32>
    %69 = arith.addf %63, %68 : vector<128x4xf32>
    %70 = vector.shape_cast %69 : vector<128x4xf32> to vector<8x16x4xf32>
    %c2_i32 = arith.constant 2 : i32
    %71 = arith.addi %1, %c2_i32 : i32
    %72 = arith.index_cast %71 : i32 to index
    %c0_77 = arith.constant 0 : index
    %c0_78 = arith.constant 0 : index
    %73 = vector.load %arg8[%72, %c0_77, %c0_78] : memref<20x16x4xbf16, #tpu.memory_space<vmem>>, vector<8x16x4xbf16>
    %74 = arith.extf %73 : vector<8x16x4xbf16> to vector<8x16x4xf32>
    %c0_79 = arith.constant 0 : index
    %c0_80 = arith.constant 0 : index
    %c0_81 = arith.constant 0 : index
    %75 = vector.load %arg6[%c0_79, %c0_80, %c0_81] : memref<1x1x4xf32, #tpu.memory_space<vmem>>, vector<1x1x4xf32>
    %76 = vector.broadcast %75 : vector<1x1x4xf32> to vector<8x16x4xf32>
    %77 = arith.addf %70, %76 : vector<8x16x4xf32>
    %78 = arith.addf %77, %74 : vector<8x16x4xf32>
    %cst_82 = arith.constant 0.000000e+00 : f32
    %79 = vector.broadcast %cst_82 : f32 to vector<8x16x4xf32>
    %80 = arith.maximumf %78, %79 : vector<8x16x4xf32>
    %81 = arith.truncf %80 : vector<8x16x4xf32> to vector<8x16x4xbf16>
    %c0_83 = arith.constant 0 : index
    %c0_84 = arith.constant 0 : index
    %c0_85 = arith.constant 0 : index
    %c0_86 = arith.constant 0 : index
    %82 = vector.load %arg7[%c0_83, %c0_84, %c0_85, %c0_86] : memref<1x8x16x4xbf16, #tpu.memory_space<vmem>>, vector<1x8x16x4xbf16>
    %83 = vector.shape_cast %82 : vector<1x8x16x4xbf16> to vector<8x16x4xbf16>
    %84 = vector.shape_cast %81 : vector<8x16x4xbf16> to vector<1x8x16x4xbf16>
    tpu.vector_store %arg7[%c0_83, %c0_84, %c0_85, %c0_86], %84 {strides = array<i32>} : memref<1x8x16x4xbf16, #tpu.memory_space<vmem>>, vector<1x8x16x4xbf16>,
    return
  }
  func.func @transform_0(%arg0: i32, %arg1: i32) -> (i32, i32, i32, i32) {
    %c0_i32 = arith.constant 0 : i32
    %c0_i32_0 = arith.constant 0 : i32
    %c0_i32_1 = arith.constant 0 : i32
    %c0_i32_2 = arith.constant 0 : i32
    return %arg0, %c0_i32, %c0_i32_0, %c0_i32_1 : i32, i32, i32, i32
  }
  func.func @transform_1(%arg0: i32, %arg1: i32) -> (i32, i32, i32) {
    %c0_i32 = arith.constant 0 : i32
    %c0_i32_0 = arith.constant 0 : i32
    %c0_i32_1 = arith.constant 0 : i32
    %c0_i32_2 = arith.constant 0 : i32
    return %c0_i32, %c0_i32_0, %c0_i32_1 : i32, i32, i32
  }
  func.func @transform_2(%arg0: i32, %arg1: i32) -> (i32, i32, i32) {
    %c0_i32 = arith.constant 0 : i32
    %c0_i32_0 = arith.constant 0 : i32
    %c0_i32_1 = arith.constant 0 : i32
    %c0_i32_2 = arith.constant 0 : i32
    return %c0_i32, %c0_i32_0, %c0_i32_1 : i32, i32, i32
  }
  func.func @transform_3(%arg0: i32, %arg1: i32) -> (i32, i32, i32) {
    %c0_i32 = arith.constant 0 : i32
    %c0_i32_0 = arith.constant 0 : i32
    %c0_i32_1 = arith.constant 0 : i32
    %c0_i32_2 = arith.constant 0 : i32
    return %c0_i32, %c0_i32_0, %c0_i32_1 : i32, i32, i32
  }
  func.func @transform_4(%arg0: i32, %arg1: i32) -> (i32, i32, i32) {
    %c0_i32 = arith.constant 0 : i32
    %c0_i32_0 = arith.constant 0 : i32
    %c0_i32_1 = arith.constant 0 : i32
    %c0_i32_2 = arith.constant 0 : i32
    return %c0_i32, %c0_i32_0, %c0_i32_1 : i32, i32, i32
  }
  func.func @transform_5(%arg0: i32, %arg1: i32) -> (i32, i32, i32, i32) {
    %c0_i32 = arith.constant 0 : i32
    %c0_i32_0 = arith.constant 0 : i32
    %c0_i32_1 = arith.constant 0 : i32
    return %arg0, %arg1, %c0_i32, %c0_i32_0 : i32, i32, i32, i32
  }
}

</mosaic_0001>

<llo_original>
// kernel: basic_block_forward.1
$region0: #{basic_block_forward.1}
  #allocation0 [shape = 'u32[]', space=smem, size = 0x4, offset = 0x4, fixed_abs, tag = 'smem constant byte address 0x4 - core index']
  #allocation1 [shape = 'u32[144,128]{1,0:T(1,128)}', space=vmem, size = 0x12000, scoped, tag = 'internal scratch']
  #allocation2 [shape = 'bf16[20,16,4]{2,1,0:T(16,128)(2,1)}', space=vmem, size = 0x14000, scoped, tag = 'scratch operand']
  #allocation3 [shape = 'bf16[12,16,12]{2,1,0:T(16,128)(2,1)}', space=vmem, size = 0xc000, scoped, tag = 'scratch operand']
  #allocation4 [shape = 'bf16[10,16,12]{2,1,0:T(16,128)(2,1)}', space=vmem, size = 0xa000, scoped, tag = 'scratch operand']
  %s0 = inlined_call_operand.vmem [shape: bf16[2,16,16,4], index: 0, kind: input, shape index: {}]
  %s1 = inlined_call_operand.vmem [shape: bf16[3,12,4], index: 1, kind: input, shape index: {}]
  %s2 = inlined_call_operand.vmem [shape: f32[1,1,4], index: 2, kind: input, shape index: {}]
  %s3 = inlined_call_operand.vmem [shape: bf16[3,12,4], index: 3, kind: input, shape index: {}]
  %s4 = inlined_call_operand.vmem [shape: f32[1,1,4], index: 4, kind: input, shape index: {}]
  %s5 = inlined_call_operand.vmem [shape: bf16[2,16,16,4], index: 5, kind: output, shape index: {}]
  %s6 = sld [smem:[#allocation0]]
  $region65: #{basic_block_forward.1} parent=0
    _
  %s8 = ssub.s32 1, %s6
  %s9 = scalar_select 0, %s8, %s6
  loop: start=0, step=1, limit=6
  $region2: #{basic_block_forward.1} parent=0 // loop_pre_header
    _
  $region3: #{basic_block_forward.1} parent=0 // loop_header
    %s11 = sphi 0, %s15
    %p12 = scmp.ge.s32.totalorder %s11, 6
    %s18 = sphi 0, %s30
    %s19 = sphi 0, %s26
    %s20 = sphi 0, %s18
    %s21 = sphi 0, %s19
    %s22 = sphi 0, %s20
    %s23 = sphi 0, %s21
    %s33 = sphi 0, %s35
    %s36 = sphi 0, %s33
    %s37 = sphi 0, %s36
    %s53 = sphi 0, %s37
    %s57 = sphi 0, %s57
    %s59 = sphi 0, %s57
    %s60 = sphi 0, %s59
    %s74 = sphi 0, %s60
    %s78 = sphi 0, %s78
    %s80 = sphi 0, %s78
    %s81 = sphi 0, %s80
    %s95 = sphi 0, %s81
    %s99 = sphi 0, %s99
    %s101 = sphi 0, %s99
    %s102 = sphi 0, %s101
    %s116 = sphi 0, %s102
    %s120 = sphi 0, %s120
    %s122 = sphi 0, %s120
    %s123 = sphi 0, %s122
    %s137 = sphi 0, %s123
    %s145 = sphi 0, %s147
    %s148 = sphi 0, %s145
    %s149 = sphi 0, %s148
    %s165 = sphi 0, %s149
  $region4: #{basic_block_forward.1} parent=0 // loop_header_branch
    %14 = sbr.rel (%p12) target = $region8
  $region5: #{basic_block_forward.1} parent=0 // loop_body
    %s16 = ssub.s32 %s11, 1
    %s17 = ssub.s32 %s11, 2
    %s24 = sadd.s32 1, %s19
    %p25 = scmp.ge.s32.totalorder %s24, 2
    %s26 = scalar_select %p25, 0, %s24
    %s27 = sadd.s32 1, %s18
    %s28 = scalar_select %p25, %s27, %s18
    %p29 = scmp.ge.s32.totalorder %s28, 2
    %s30 = scalar_select %p29, 0, %s28
    %s31 = ssub.s32 %s18, %s30
    %p32 = scmp.eq.s32.totalorder %s31, 0
    %s34 = sadd.s32 %s33, 1
    %s35 = scalar_select %p32, %s33, %s34
    %p38 = pneg %p32
    %p39 = scmp.eq.s32.totalorder %s11, 3
    %p40 = por %p38, %p39
    %p41 = scmp.ne.s32.totalorder %s33, %s36
    %p42 = scmp.eq.s32.totalorder %s11, 0
    %p43 = por %p41, %p42
    %p44 = scmp.ne.s32.totalorder %s33, %s36
    %p45 = scmp.eq.s32.totalorder %s16, 3
    %p46 = por %p44, %p45
    %p47 = scmp.ne.s32.totalorder %s36, %s37
    %p48 = scmp.eq.s32.totalorder %s16, 0
    %p49 = por %p47, %p48
    %p50 = scmp.ne.s32.totalorder %s36, %s37
    %p51 = scmp.eq.s32.totalorder %s17, 3
    %p52 = por %p50, %p51
    %p54 = scmp.ne.s32.totalorder %s37, %s53
    %p55 = scmp.eq.s32.totalorder %s17, 0
    %p56 = por %p54, %p55
    %s58 = sadd.s32 %s57, 1
    %p61 = scmp.eq.s32.totalorder %s11, 3
    %p62 = scmp.ne.s32.totalorder %s57, %s59
    %p63 = scmp.eq.s32.totalorder %s11, 0
    %p64 = por %p62, %p63
    %p65 = scmp.ne.s32.totalorder %s57, %s59
    %p66 = scmp.eq.s32.totalorder %s16, 3
    %p67 = por %p65, %p66
    %p68 = scmp.ne.s32.totalorder %s59, %s60
    %p69 = scmp.eq.s32.totalorder %s16, 0
    %p70 = por %p68, %p69
    %p71 = scmp.ne.s32.totalorder %s59, %s60
    %p72 = scmp.eq.s32.totalorder %s17, 3
    %p73 = por %p71, %p72
    %p75 = scmp.ne.s32.totalorder %s60, %s74
    %p76 = scmp.eq.s32.totalorder %s17, 0
    %p77 = por %p75, %p76
    %s79 = sadd.s32 %s78, 1
    %p82 = scmp.eq.s32.totalorder %s11, 3
    %p83 = scmp.ne.s32.totalorder %s78, %s80
    %p84 = scmp.eq.s32.totalorder %s11, 0
    %p85 = por %p83, %p84
    %p86 = scmp.ne.s32.totalorder %s78, %s80
    %p87 = scmp.eq.s32.totalorder %s16, 3
    %p88 = por %p86, %p87
    %p89 = scmp.ne.s32.totalorder %s80, %s81
    %p90 = scmp.eq.s32.totalorder %s16, 0
    %p91 = por %p89, %p90
    %p92 = scmp.ne.s32.totalorder %s80, %s81
    %p93 = scmp.eq.s32.totalorder %s17, 3
    %p94 = por %p92, %p93
    %p96 = scmp.ne.s32.totalorder %s81, %s95
    %p97 = scmp.eq.s32.totalorder %s17, 0
    %p98 = por %p96, %p97
    %s100 = sadd.s32 %s99, 1
    %p103 = scmp.eq.s32.totalorder %s11, 3
    %p104 = scmp.ne.s32.totalorder %s99, %s101
    %p105 = scmp.eq.s32.totalorder %s11, 0
    %p106 = por %p104, %p105
    %p107 = scmp.ne.s32.totalorder %s99, %s101
    %p108 = scmp.eq.s32.totalorder %s16, 3
    %p109 = por %p107, %p108
    %p110 = scmp.ne.s32.totalorder %s101, %s102
    %p111 = scmp.eq.s32.totalorder %s16, 0
    %p112 = por %p110, %p111
    %p113 = scmp.ne.s32.totalorder %s101, %s102
    %p114 = scmp.eq.s32.totalorder %s17, 3
    %p115 = por %p113, %p114
    %p117 = scmp.ne.s32.totalorder %s102, %s116
    %p118 = scmp.eq.s32.totalorder %s17, 0
    %p119 = por %p117, %p118
    %s121 = sadd.s32 %s120, 1
    %p124 = scmp.eq.s32.totalorder %s11, 3
    %p125 = scmp.ne.s32.totalorder %s120, %s122
    %p126 = scmp.eq.s32.totalorder %s11, 0
    %p127 = por %p125, %p126
    %p128 = scmp.ne.s32.totalorder %s120, %s122
    %p129 = scmp.eq.s32.totalorder %s16, 3
    %p130 = por %p128, %p129
    %p131 = scmp.ne.s32.totalorder %s122, %s123
    %p132 = scmp.eq.s32.totalorder %s16, 0
    %p133 = por %p131, %p132
    %p134 = scmp.ne.s32.totalorder %s122, %s123
    %p135 = scmp.eq.s32.totalorder %s17, 3
    %p136 = por %p134, %p135
    %p138 = scmp.ne.s32.totalorder %s123, %s137
    %p139 = scmp.eq.s32.totalorder %s17, 0
    %p140 = por %p138, %p139
    %s141 = ssub.s32 %s18, %s30
    %s142 = ssub.s32 %s19, %s26
    %s143 = sor.u32 %s141, %s142
    %p144 = scmp.eq.s32.totalorder %s143, 0
    %s146 = sadd.s32 %s145, 1
    %s147 = scalar_select %p144, %s145, %s146
    %p150 = pneg %p144
    %p151 = scmp.eq.s32.totalorder %s11, 3
    %p152 = por %p150, %p151
    %p153 = scmp.ne.s32.totalorder %s145, %s148
    %p154 = scmp.eq.s32.totalorder %s11, 0
    %p155 = por %p153, %p154
    %p156 = scmp.ne.s32.totalorder %s145, %s148
    %p157 = scmp.eq.s32.totalorder %s16, 3
    %p158 = por %p156, %p157
    %p159 = scmp.ne.s32.totalorder %s148, %s149
    %p160 = scmp.eq.s32.totalorder %s16, 0
    %p161 = por %p159, %p160
    %p162 = scmp.ne.s32.totalorder %s148, %s149
    %p163 = scmp.eq.s32.totalorder %s17, 3
    %p164 = por %p162, %p163
    %p166 = scmp.ne.s32.totalorder %s149, %s165
    %p167 = scmp.eq.s32.totalorder %s17, 0
    %p168 = por %p166, %p167
    %p169 = scmp.le.s32.totalorder 1, %s11
    %p170 = scmp.lt.s32.totalorder %s11, 5
    %p171 = pnand %p169, %p170
    %p172 = pneg %p171
    // Predicated region
    $region9: #{basic_block_forward.1} parent=5 // pred_check
      _
    $region10: #{basic_block_forward.1} parent=5 // pred_check_branch
      %174 = sbr.rel (%p171) target = $region12
    $region11: #{basic_block_forward.1} parent=5 // pred_region
      %s175 = ssub.s32 %s11, 1
      // Predicated region
      $region13: #{basic_block_forward.1} parent=11 // pred_check
        %p176 = pneg %p70
      $region14: #{basic_block_forward.1} parent=11 // pred_check_branch
        %178 = sbr.rel (%p176) target = $region16
      $region15: #{basic_block_forward.1} parent=11 // pred_region
        _
      $region16: #{basic_block_forward.1} parent=11 // pred_fallthru
        _
      // Predicated region
      $region17: #{basic_block_forward.1} parent=11 // pred_check
        %p179 = pneg %p91
      $region18: #{basic_block_forward.1} parent=11 // pred_check_branch
        %181 = sbr.rel (%p179) target = $region20
      $region19: #{basic_block_forward.1} parent=11 // pred_region
        _
      $region20: #{basic_block_forward.1} parent=11 // pred_fallthru
        _
      // Predicated region
      $region21: #{basic_block_forward.1} parent=11 // pred_check
        %p182 = pneg %p112
      $region22: #{basic_block_forward.1} parent=11 // pred_check_branch
        %184 = sbr.rel (%p182) target = $region24
      $region23: #{basic_block_forward.1} parent=11 // pred_region
        _
      $region24: #{basic_block_forward.1} parent=11 // pred_fallthru
        _
      // Predicated region
      $region25: #{basic_block_forward.1} parent=11 // pred_check
        %p185 = pneg %p133
      $region26: #{basic_block_forward.1} parent=11 // pred_check_branch
        %187 = sbr.rel (%p185) target = $region28
      $region27: #{basic_block_forward.1} parent=11 // pred_region
        _
      $region28: #{basic_block_forward.1} parent=11 // pred_fallthru
        _
    $region12: #{basic_block_forward.1} parent=5 // pred_fallthru
      _
    %p188 = scmp.lt.s32.totalorder %s11, 4
    // Predicated region
    $region29: #{basic_block_forward.1} parent=5 // pred_check
      %p189 = pneg %p188
    $region30: #{basic_block_forward.1} parent=5 // pred_check_branch
      %191 = sbr.rel (%p189) target = $region32
    $region31: #{basic_block_forward.1} parent=5 // pred_region
      // Predicated region
      $region33: #{basic_block_forward.1} parent=31 // pred_check
        %p192 = pneg %p43
      $region34: #{basic_block_forward.1} parent=31 // pred_check_branch
        %194 = sbr.rel (%p192) target = $region36
      $region35: #{basic_block_forward.1} parent=31 // pred_region
        %p195 = scmp.lt.s32.totalorder %s18, 1
        %s196 = scalar_select %p195, %s18, 1
        %s197 = smul.addr %s196, 32
        %s198 = smul.addr %s197, 4
        %s199 = scalar_lea.vmem %s0, %s198
      $region36: #{basic_block_forward.1} parent=31 // pred_fallthru
        _
    $region32: #{basic_block_forward.1} parent=5 // pred_fallthru
      _
    %p200 = scmp.le.s32.totalorder 1, %s11
    %p201 = scmp.lt.s32.totalorder %s11, 5
    %p202 = pnand %p200, %p201
    %p203 = pneg %p202
    // Predicated region
    $region37: #{basic_block_forward.1} parent=5 // pred_check
      _
    $region38: #{basic_block_forward.1} parent=5 // pred_check_branch
      %205 = sbr.rel (%p202) target = $region40
    $region39: #{basic_block_forward.1} parent=5 // pred_region
      %s206 = ssub.s32 %s11, 1
      %p207 = scmp.lt.s32.totalorder %s20, 1
      %s208 = scalar_select %p207, %s20, 1
      %s209 = smul.addr %s208, 32
      %s210 = smul.addr %s209, 4
      %s211 = scalar_lea.vmem %s0, %s210
      %p212 = pneg %p49
      %p213 = pneg %p46
      %p214 = pneg %p70
      %p215 = pneg %p67
      %p216 = pneg %p91
      %p217 = pneg %p88
      %p218 = pneg %p112
      %p219 = pneg %p109
      %p220 = pneg %p133
      %p221 = pneg %p130
      %p222 = pneg %p161
      %p223 = pneg %p158
      %s224 = smul.u32 8, %s21
      %p225 = scmp.lt.s32.totalorder %s20, 1
      %s226 = scalar_select %p225, %s20, 1
      %p227 = scmp.lt.s32.totalorder %s224, 15
      %s228 = scalar_select %p227, %s224, 15
      %s229 = smul.addr %s228, 2
      %s230 = smul.addr %s226, 32
      %s231 = sadd.s32 %s229, %s230
      %s232 = smul.addr %s231, 4
      %s233 = scalar_lea.vmem %s5, %s232
      %p234 = scmp.lt.s32.totalorder %s20, 1
      %s235 = scalar_select %p234, %s20, 1
      %s236 = smul.addr %s235, 32
      %s237 = smul.addr %s236, 4
      %s238 = scalar_lea.vmem %s0, %s237
      %s239 = smul.u32 8, %s21
      %p240 = scmp.lt.s32.totalorder %s20, 1
      %s241 = scalar_select %p240, %s20, 1
      %p242 = scmp.lt.s32.totalorder %s239, 15
      %s243 = scalar_select %p242, %s239, 15
      %s244 = smul.addr %s243, 2
      %s245 = smul.addr %s241, 32
      %s246 = sadd.s32 %s244, %s245
      %s247 = smul.addr %s246, 4
      %s248 = scalar_lea.vmem %s5, %s247
      %s249 = smul.u32 8, %s21
      %s251 = smul.u32 %s21, 8
      %p252 = scmp.eq.s32.totalorder %s21, 0
      // Predicated region
      $region41: #{basic_block_forward.1} parent=39 // pred_check
        %p253 = pneg %p252
      $region42: #{basic_block_forward.1} parent=39 // pred_check_branch
        %255 = sbr.rel (%p253) target = $region44
      $region43: #{basic_block_forward.1} parent=39 // pred_region
        %vm256 = vcmask 31744
        %257 = vst.msk [vmem:[#allocation2] sm:$0xff] %vm256, 0
        %258 = vst.msk [vmem:[#allocation2 + $0x8] sm:$0xff] %vm256, 0
        %s259 = scalar_lea.vmem [#allocation2], 144
        %260 = vst.msk [vmem:[%s259] sm:$0xff] %vm256, 0
        %261 = vst.msk [vmem:[%s259 + $0x8] sm:$0xff] %vm256, 0
        %v262 = vld [vmem:[%s238] sm:$0xf]
        %v263 = vld [vmem:[%s238 + $0x4] sm:$0xf]
        %v264 = vld [vmem:[%s238 + $0x8] sm:$0xf]
        %v265 = vld [vmem:[%s238 + $0xc] sm:$0xf]
        %v266 = vld [vmem:[%s238 + $0x10] sm:$0xf]
        %v267 = vld [vmem:[%s238 + $0x14] sm:$0xf]
        %v268 = vld [vmem:[%s238 + $0x18] sm:$0xf]
        %v269 = vld [vmem:[%s238 + $0x1c] sm:$0xf]
        %v270 = vld [vmem:[%s238 + $0x20] sm:$0xf]
        %v271 = vld [vmem:[%s238 + $0x24] sm:$0xf]
        %v272 = vld [vmem:[%s238 + $0x28] sm:$0xf]
        %v273 = vld [vmem:[%s238 + $0x2c] sm:$0xf]
        %v274 = vld [vmem:[%s238 + $0x30] sm:$0xf]
        %v275 = vld [vmem:[%s238 + $0x34] sm:$0xf]
        %v276 = vld [vmem:[%s238 + $0x38] sm:$0xf]
        %v277 = vld [vmem:[%s238 + $0x3c] sm:$0xf]
        %v278 = vld [vmem:[%s238 + $0x40] sm:$0xf]
        %v279 = vld [vmem:[%s238 + $0x44] sm:$0xf]
        %v280 = vld [vmem:[%s238 + $0x48] sm:$0xf]
        %v281 = vld [vmem:[%s238 + $0x4c] sm:$0xf]
        %v282 = vld [vmem:[%s238 + $0x50] sm:$0xf]
        %v283 = vld [vmem:[%s238 + $0x54] sm:$0xf]
        %v284 = vld [vmem:[%s238 + $0x58] sm:$0xf]
        %v285 = vld [vmem:[%s238 + $0x5c] sm:$0xf]
        %v286 = vld [vmem:[%s238 + $0x60] sm:$0xf]
        %v287 = vld [vmem:[%s238 + $0x64] sm:$0xf]
        %v288 = vld [vmem:[%s238 + $0x68] sm:$0xf]
        %v289 = vld [vmem:[%s238 + $0x6c] sm:$0xf]
        %v290 = vld [vmem:[%s238 + $0x70] sm:$0xf]
        %v291 = vld [vmem:[%s238 + $0x74] sm:$0xf]
        %v292 = vld [vmem:[%s238 + $0x78] sm:$0xf]
        %v293 = vld [vmem:[%s238 + $0x7c] sm:$0xf]
        %v326 = vunpack.c.l.b16 %v262
        %v327 = vunpack.c.l.b16 %v263
        %v328 = vunpack.c.l.b16 %v264
        %v329 = vunpack.c.l.b16 %v265
        %v330 = vunpack.c.l.b16 %v266
        %v331 = vunpack.c.l.b16 %v267
        %v332 = vunpack.c.l.b16 %v268
        %v333 = vunpack.c.l.b16 %v269
        %v334 = vunpack.c.l.b16 %v270
        %v335 = vunpack.c.l.b16 %v271
        %v336 = vunpack.c.l.b16 %v272
        %v337 = vunpack.c.l.b16 %v273
        %v338 = vunpack.c.l.b16 %v274
        %v339 = vunpack.c.l.b16 %v275
        %v340 = vunpack.c.l.b16 %v276
        %v341 = vunpack.c.l.b16 %v277
        %v342 = vunpack.c.l.b16 %v278
        %v343 = vunpack.c.l.b16 %v279
        %v344 = vunpack.c.l.b16 %v280
        %v345 = vunpack.c.l.b16 %v281
        %v346 = vunpack.c.l.b16 %v282
        %v347 = vunpack.c.l.b16 %v283
        %v348 = vunpack.c.l.b16 %v284
        %v349 = vunpack.c.l.b16 %v285
        %v350 = vunpack.c.l.b16 %v286
        %v351 = vunpack.c.l.b16 %v287
        %v352 = vunpack.c.l.b16 %v288
        %v353 = vunpack.c.l.b16 %v289
        %v354 = vunpack.c.l.b16 %v290
        %v355 = vunpack.c.l.b16 %v291
        %v356 = vunpack.c.l.b16 %v292
        %v357 = vunpack.c.l.b16 %v293
        %v358 = vpack.c.b16 %v327, %v326
        %v359 = vpack.c.b16 %v329, %v328
        %v360 = vpack.c.b16 %v331, %v330
        %v361 = vpack.c.b16 %v333, %v332
        %v362 = vpack.c.b16 %v335, %v334
        %v363 = vpack.c.b16 %v337, %v336
        %v364 = vpack.c.b16 %v339, %v338
        %v365 = vpack.c.b16 %v341, %v340
        %v366 = vpack.c.b16 %v343, %v342
        %v367 = vpack.c.b16 %v345, %v344
        %v368 = vpack.c.b16 %v347, %v346
        %v369 = vpack.c.b16 %v349, %v348
        %v370 = vpack.c.b16 %v351, %v350
        %v371 = vpack.c.b16 %v353, %v352
        %v372 = vpack.c.b16 %v355, %v354
        %v373 = vpack.c.b16 %v357, %v356
        %s390 = scalar_lea.vmem [#allocation2], 16
        %391 = vst.msk [vmem:[%s390] sm:$0xff] %vm256, %v358
        %392 = vst.msk [vmem:[%s390 + $0x8] sm:$0xff] %vm256, %v359
        %393 = vst.msk [vmem:[%s390 + $0x10] sm:$0xff] %vm256, %v360
        %394 = vst.msk [vmem:[%s390 + $0x18] sm:$0xff] %vm256, %v361
        %395 = vst.msk [vmem:[%s390 + $0x20] sm:$0xff] %vm256, %v362
        %396 = vst.msk [vmem:[%s390 + $0x28] sm:$0xff] %vm256, %v363
        %397 = vst.msk [vmem:[%s390 + $0x30] sm:$0xff] %vm256, %v364
        %398 = vst.msk [vmem:[%s390 + $0x38] sm:$0xff] %vm256, %v365
        %399 = vst.msk [vmem:[%s390 + $0x40] sm:$0xff] %vm256, %v366
        %400 = vst.msk [vmem:[%s390 + $0x48] sm:$0xff] %vm256, %v367
        %401 = vst.msk [vmem:[%s390 + $0x50] sm:$0xff] %vm256, %v368
        %402 = vst.msk [vmem:[%s390 + $0x58] sm:$0xff] %vm256, %v369
        %403 = vst.msk [vmem:[%s390 + $0x60] sm:$0xff] %vm256, %v370
        %404 = vst.msk [vmem:[%s390 + $0x68] sm:$0xff] %vm256, %v371
        %405 = vst.msk [vmem:[%s390 + $0x70] sm:$0xff] %vm256, %v372
        %406 = vst.msk [vmem:[%s390 + $0x78] sm:$0xff] %vm256, %v373
      $region44: #{basic_block_forward.1} parent=39 // pred_fallthru
        _
      %s407 = smul.addr %s251, 8
      %s408 = scalar_lea.vmem [#allocation2], %s407
      %v409 = vld [vmem:[%s408] sm:$0xff]
      %v410 = vld [vmem:[%s408 + $0x8] sm:$0xff]
      %v411 = vld [vmem:[%s408 + $0x10] sm:$0xff]
      %v412 = vld [vmem:[%s408 + $0x18] sm:$0xff]
      %v413 = vld [vmem:[%s408 + $0x20] sm:$0xff]
      %v414 = vld [vmem:[%s408 + $0x28] sm:$0xff]
      %v415 = vld [vmem:[%s408 + $0x30] sm:$0xff]
      %v416 = vld [vmem:[%s408 + $0x38] sm:$0xff]
      %v417 = vld [vmem:[%s408 + $0x40] sm:$0xff]
      %v418 = vld [vmem:[%s408 + $0x48] sm:$0xff]
      %v419 = vld [vmem:[%s408 + $0x50] sm:$0xff]
      %v420 = vld [vmem:[%s408 + $0x58] sm:$0xff]
      %433 = vrot.lane.b32.xlu0 %v409, 4
      %v434 = vpop.permute.xlu0 %433
      %435 = vrot.lane.b32.xlu0 %v410, 4
      %v436 = vpop.permute.xlu0 %435
      %437 = vrot.lane.b32.xlu0 %v411, 4
      %v438 = vpop.permute.xlu0 %437
      %439 = vrot.lane.b32.xlu0 %v412, 4
      %v440 = vpop.permute.xlu0 %439
      %441 = vrot.lane.b32.xlu0 %v413, 4
      %v442 = vpop.permute.xlu0 %441
      %443 = vrot.lane.b32.xlu0 %v414, 4
      %v444 = vpop.permute.xlu0 %443
      %445 = vrot.lane.b32.xlu0 %v415, 4
      %v446 = vpop.permute.xlu0 %445
      %447 = vrot.lane.b32.xlu0 %v416, 4
      %v448 = vpop.permute.xlu0 %447
      %449 = vrot.lane.b32.xlu0 %v417, 4
      %v450 = vpop.permute.xlu0 %449
      %451 = vrot.lane.b32.xlu0 %v418, 4
      %v452 = vpop.permute.xlu0 %451
      %453 = vrot.lane.b32.xlu0 %v419, 4
      %v454 = vpop.permute.xlu0 %453
      %455 = vrot.lane.b32.xlu0 %v420, 4
      %v456 = vpop.permute.xlu0 %455
      %vm469 = vcmask 64544
      %470 = vst.msk [vmem:[#allocation3] sm:$0xff] %vm469, %v434
      %471 = vst.msk [vmem:[#allocation3 + $0x8] sm:$0xff] %vm469, %v436
      %472 = vst.msk [vmem:[#allocation3 + $0x10] sm:$0xff] %vm469, %v438
      %473 = vst.msk [vmem:[#allocation3 + $0x18] sm:$0xff] %vm469, %v440
      %474 = vst.msk [vmem:[#allocation3 + $0x20] sm:$0xff] %vm469, %v442
      %475 = vst.msk [vmem:[#allocation3 + $0x28] sm:$0xff] %vm469, %v444
      %476 = vst.msk [vmem:[#allocation3 + $0x30] sm:$0xff] %vm469, %v446
      %477 = vst.msk [vmem:[#allocation3 + $0x38] sm:$0xff] %vm469, %v448
      %478 = vst.msk [vmem:[#allocation3 + $0x40] sm:$0xff] %vm469, %v450
      %479 = vst.msk [vmem:[#allocation3 + $0x48] sm:$0xff] %vm469, %v452
      %480 = vst.msk [vmem:[#allocation3 + $0x50] sm:$0xff] %vm469, %v454
      %481 = vst.msk [vmem:[#allocation3 + $0x58] sm:$0xff] %vm469, %v456
      %v483 = vshrl.u32 %v409, 16
      %v485 = vrot.slane %v483, 7
      %v486 = vshll.u32 %v409, 16
      %v488 = vor.u32 %v485, %v486
      %v490 = vshrl.u32 %v410, 16
      %v492 = vrot.slane %v490, 7
      %v493 = vshll.u32 %v410, 16
      %v495 = vor.u32 %v492, %v493
      %v497 = vshrl.u32 %v411, 16
      %v499 = vrot.slane %v497, 7
      %v500 = vshll.u32 %v411, 16
      %v502 = vor.u32 %v499, %v500
      %v504 = vshrl.u32 %v412, 16
      %v506 = vrot.slane %v504, 7
      %v507 = vshll.u32 %v412, 16
      %v509 = vor.u32 %v506, %v507
      %v511 = vshrl.u32 %v413, 16
      %v513 = vrot.slane %v511, 7
      %v514 = vshll.u32 %v413, 16
      %v516 = vor.u32 %v513, %v514
      %v518 = vshrl.u32 %v414, 16
      %v520 = vrot.slane %v518, 7
      %v521 = vshll.u32 %v414, 16
      %v523 = vor.u32 %v520, %v521
      %v525 = vshrl.u32 %v415, 16
      %v527 = vrot.slane %v525, 7
      %v528 = vshll.u32 %v415, 16
      %v530 = vor.u32 %v527, %v528
      %v532 = vshrl.u32 %v416, 16
      %v534 = vrot.slane %v532, 7
      %v535 = vshll.u32 %v416, 16
      %v537 = vor.u32 %v534, %v535
      %v539 = vshrl.u32 %v417, 16
      %v541 = vrot.slane %v539, 7
      %v542 = vshll.u32 %v417, 16
      %v544 = vor.u32 %v541, %v542
      %v546 = vshrl.u32 %v418, 16
      %v548 = vrot.slane %v546, 7
      %v549 = vshll.u32 %v418, 16
      %v551 = vor.u32 %v548, %v549
      %v553 = vshrl.u32 %v419, 16
      %v555 = vrot.slane %v553, 7
      %v556 = vshll.u32 %v419, 16
      %v558 = vor.u32 %v555, %v556
      %v560 = vshrl.u32 %v420, 16
      %v562 = vrot.slane %v560, 7
      %v563 = vshll.u32 %v420, 16
      %v565 = vor.u32 %v562, %v563
      %vm578 = vcmask 31744
      %vm579 = vsmask.f32 7938
      %vm580 = vmand %vm578, %vm579
      %v581 = vld [vmem:[#allocation3] sm:$0xff]
      %v582 = vsel %vm580, %v488, %v581
      %583 = vst [vmem:[#allocation3] sm:$0xff] %v582
      %v584 = vld [vmem:[#allocation3 + $0x8] sm:$0xff]
      %v585 = vsel %vm580, %v495, %v584
      %586 = vst [vmem:[#allocation3 + $0x8] sm:$0xff] %v585
      %v587 = vld [vmem:[#allocation3 + $0x10] sm:$0xff]
      %v588 = vsel %vm580, %v502, %v587
      %589 = vst [vmem:[#allocation3 + $0x10] sm:$0xff] %v588
      %v590 = vld [vmem:[#allocation3 + $0x18] sm:$0xff]
      %v591 = vsel %vm580, %v509, %v590
      %592 = vst [vmem:[#allocation3 + $0x18] sm:$0xff] %v591
      %v593 = vld [vmem:[#allocation3 + $0x20] sm:$0xff]
      %v594 = vsel %vm580, %v516, %v593
      %595 = vst [vmem:[#allocation3 + $0x20] sm:$0xff] %v594
      %v596 = vld [vmem:[#allocation3 + $0x28] sm:$0xff]
      %v597 = vsel %vm580, %v523, %v596
      %598 = vst [vmem:[#allocation3 + $0x28] sm:$0xff] %v597
      %v599 = vld [vmem:[#allocation3 + $0x30] sm:$0xff]
      %v600 = vsel %vm580, %v530, %v599
      %601 = vst [vmem:[#allocation3 + $0x30] sm:$0xff] %v600
      %v602 = vld [vmem:[#allocation3 + $0x38] sm:$0xff]
      %v603 = vsel %vm580, %v537, %v602
      %604 = vst [vmem:[#allocation3 + $0x38] sm:$0xff] %v603
      %v605 = vld [vmem:[#allocation3 + $0x40] sm:$0xff]
      %v606 = vsel %vm580, %v544, %v605
      %607 = vst [vmem:[#allocation3 + $0x40] sm:$0xff] %v606
      %v608 = vld [vmem:[#allocation3 + $0x48] sm:$0xff]
      %v609 = vsel %vm580, %v551, %v608
      %610 = vst [vmem:[#allocation3 + $0x48] sm:$0xff] %v609
      %v611 = vld [vmem:[#allocation3 + $0x50] sm:$0xff]
      %v612 = vsel %vm580, %v558, %v611
      %613 = vst [vmem:[#allocation3 + $0x50] sm:$0xff] %v612
      %v614 = vld [vmem:[#allocation3 + $0x58] sm:$0xff]
      %v615 = vsel %vm580, %v565, %v614
      %616 = vst [vmem:[#allocation3 + $0x58] sm:$0xff] %v615
      %vm617 = vcmask 24576
      %vm618 = vsmask.f32 256
      %vm619 = vmand %vm617, %vm618
      %v620 = vld [vmem:[#allocation3] sm:$0x1]
      %v621 = vsel %vm619, 0, %v620
      %622 = vst [vmem:[#allocation3] sm:$0x1] %v621
      %v623 = vld [vmem:[#allocation3 + $0x8] sm:$0x1]
      %v624 = vsel %vm619, 0, %v623
      %625 = vst [vmem:[#allocation3 + $0x8] sm:$0x1] %v624
      %v626 = vld [vmem:[#allocation3 + $0x10] sm:$0x1]
      %v627 = vsel %vm619, 0, %v626
      %628 = vst [vmem:[#allocation3 + $0x10] sm:$0x1] %v627
      %v629 = vld [vmem:[#allocation3 + $0x18] sm:$0x1]
      %v630 = vsel %vm619, 0, %v629
      %631 = vst [vmem:[#allocation3 + $0x18] sm:$0x1] %v630
      %v632 = vld [vmem:[#allocation3 + $0x20] sm:$0x1]
      %v633 = vsel %vm619, 0, %v632
      %634 = vst [vmem:[#allocation3 + $0x20] sm:$0x1] %v633
      %v635 = vld [vmem:[#allocation3 + $0x28] sm:$0x1]
      %v636 = vsel %vm619, 0, %v635
      %637 = vst [vmem:[#allocation3 + $0x28] sm:$0x1] %v636
      %v638 = vld [vmem:[#allocation3 + $0x30] sm:$0x1]
      %v639 = vsel %vm619, 0, %v638
      %640 = vst [vmem:[#allocation3 + $0x30] sm:$0x1] %v639
      %v641 = vld [vmem:[#allocation3 + $0x38] sm:$0x1]
      %v642 = vsel %vm619, 0, %v641
      %643 = vst [vmem:[#allocation3 + $0x38] sm:$0x1] %v642
      %v644 = vld [vmem:[#allocation3 + $0x40] sm:$0x1]
      %v645 = vsel %vm619, 0, %v644
      %646 = vst [vmem:[#allocation3 + $0x40] sm:$0x1] %v645
      %v647 = vld [vmem:[#allocation3 + $0x48] sm:$0x1]
      %v648 = vsel %vm619, 0, %v647
      %649 = vst [vmem:[#allocation3 + $0x48] sm:$0x1] %v648
      %v650 = vld [vmem:[#allocation3 + $0x50] sm:$0x1]
      %v651 = vsel %vm619, 0, %v650
      %652 = vst [vmem:[#allocation3 + $0x50] sm:$0x1] %v651
      %v653 = vld [vmem:[#allocation3 + $0x58] sm:$0x1]
      %v654 = vsel %vm619, 0, %v653
      %655 = vst [vmem:[#allocation3 + $0x58] sm:$0x1] %v654
      %v656 = vrot.slane %v486, 1
      %v657 = vor.u32 %v483, %v656
      %v658 = vrot.slane %v493, 1
      %v659 = vor.u32 %v490, %v658
      %v660 = vrot.slane %v500, 1
      %v661 = vor.u32 %v497, %v660
      %v662 = vrot.slane %v507, 1
      %v663 = vor.u32 %v504, %v662
      %v664 = vrot.slane %v514, 1
      %v665 = vor.u32 %v511, %v664
      %v666 = vrot.slane %v521, 1
      %v667 = vor.u32 %v518, %v666
      %v668 = vrot.slane %v528, 1
      %v669 = vor.u32 %v525, %v668
      %v670 = vrot.slane %v535, 1
      %v671 = vor.u32 %v532, %v670
      %v672 = vrot.slane %v542, 1
      %v673 = vor.u32 %v539, %v672
      %v674 = vrot.slane %v549, 1
      %v675 = vor.u32 %v546, %v674
      %v676 = vrot.slane %v556, 1
      %v677 = vor.u32 %v553, %v676
      %v678 = vrot.slane %v563, 1
      %v679 = vor.u32 %v560, %v678
      %680 = vrot.lane.b32.xlu0 %v657, 8
      %v681 = vpop.permute.xlu0 %680
      %682 = vrot.lane.b32.xlu0 %v659, 8
      %v683 = vpop.permute.xlu0 %682
      %684 = vrot.lane.b32.xlu0 %v661, 8
      %v685 = vpop.permute.xlu0 %684
      %686 = vrot.lane.b32.xlu0 %v663, 8
      %v687 = vpop.permute.xlu0 %686
      %688 = vrot.lane.b32.xlu0 %v665, 8
      %v689 = vpop.permute.xlu0 %688
      %690 = vrot.lane.b32.xlu0 %v667, 8
      %v691 = vpop.permute.xlu0 %690
      %692 = vrot.lane.b32.xlu0 %v669, 8
      %v693 = vpop.permute.xlu0 %692
      %694 = vrot.lane.b32.xlu0 %v671, 8
      %v695 = vpop.permute.xlu0 %694
      %696 = vrot.lane.b32.xlu0 %v673, 8
      %v697 = vpop.permute.xlu0 %696
      %698 = vrot.lane.b32.xlu0 %v675, 8
      %v699 = vpop.permute.xlu0 %698
      %700 = vrot.lane.b32.xlu0 %v677, 8
      %v701 = vpop.permute.xlu0 %700
      %702 = vrot.lane.b32.xlu0 %v679, 8
      %v703 = vpop.permute.xlu0 %702
      %vm716 = vcmask 97344
      %vm717 = vsmask.f32 7424
      %vm718 = vmand %vm716, %vm717
      %v719 = vld [vmem:[#allocation3] sm:$0xff]
      %v720 = vsel %vm718, %v681, %v719
      %721 = vst [vmem:[#allocation3] sm:$0xff] %v720
      %v722 = vld [vmem:[#allocation3 + $0x8] sm:$0xff]
      %v723 = vsel %vm718, %v683, %v722
      %724 = vst [vmem:[#allocation3 + $0x8] sm:$0xff] %v723
      %v725 = vld [vmem:[#allocation3 + $0x10] sm:$0xff]
      %v726 = vsel %vm718, %v685, %v725
      %727 = vst [vmem:[#allocation3 + $0x10] sm:$0xff] %v726
      %v728 = vld [vmem:[#allocation3 + $0x18] sm:$0xff]
      %v729 = vsel %vm718, %v687, %v728
      %730 = vst [vmem:[#allocation3 + $0x18] sm:$0xff] %v729
      %v731 = vld [vmem:[#allocation3 + $0x20] sm:$0xff]
      %v732 = vsel %vm718, %v689, %v731
      %733 = vst [vmem:[#allocation3 + $0x20] sm:$0xff] %v732
      %v734 = vld [vmem:[#allocation3 + $0x28] sm:$0xff]
      %v735 = vsel %vm718, %v691, %v734
      %736 = vst [vmem:[#allocation3 + $0x28] sm:$0xff] %v735
      %v737 = vld [vmem:[#allocation3 + $0x30] sm:$0xff]
      %v738 = vsel %vm718, %v693, %v737
      %739 = vst [vmem:[#allocation3 + $0x30] sm:$0xff] %v738
      %v740 = vld [vmem:[#allocation3 + $0x38] sm:$0xff]
      %v741 = vsel %vm718, %v695, %v740
      %742 = vst [vmem:[#allocation3 + $0x38] sm:$0xff] %v741
      %v743 = vld [vmem:[#allocation3 + $0x40] sm:$0xff]
      %v744 = vsel %vm718, %v697, %v743
      %745 = vst [vmem:[#allocation3 + $0x40] sm:$0xff] %v744
      %v746 = vld [vmem:[#allocation3 + $0x48] sm:$0xff]
      %v747 = vsel %vm718, %v699, %v746
      %748 = vst [vmem:[#allocation3 + $0x48] sm:$0xff] %v747
      %v749 = vld [vmem:[#allocation3 + $0x50] sm:$0xff]
      %v750 = vsel %vm718, %v701, %v749
      %751 = vst [vmem:[#allocation3 + $0x50] sm:$0xff] %v750
      %v752 = vld [vmem:[#allocation3 + $0x58] sm:$0xff]
      %v753 = vsel %vm718, %v703, %v752
      %754 = vst [vmem:[#allocation3 + $0x58] sm:$0xff] %v753
      %vm755 = vcmask 97351
      %vm756 = vsmask.f32 7966
      %vm757 = vmand %vm755, %vm756
      %v758 = vld [vmem:[#allocation3] sm:$0x80]
      %v759 = vsel %vm757, 0, %v758
      %760 = vst [vmem:[#allocation3] sm:$0x80] %v759
      %v761 = vld [vmem:[#allocation3 + $0x8] sm:$0x80]
      %v762 = vsel %vm757, 0, %v761
      %763 = vst [vmem:[#allocation3 + $0x8] sm:$0x80] %v762
      %v764 = vld [vmem:[#allocation3 + $0x10] sm:$0x80]
      %v765 = vsel %vm757, 0, %v764
      %766 = vst [vmem:[#allocation3 + $0x10] sm:$0x80] %v765
      %v767 = vld [vmem:[#allocation3 + $0x18] sm:$0x80]
      %v768 = vsel %vm757, 0, %v767
      %769 = vst [vmem:[#allocation3 + $0x18] sm:$0x80] %v768
      %v770 = vld [vmem:[#allocation3 + $0x20] sm:$0x80]
      %v771 = vsel %vm757, 0, %v770
      %772 = vst [vmem:[#allocation3 + $0x20] sm:$0x80] %v771
      %v773 = vld [vmem:[#allocation3 + $0x28] sm:$0x80]
      %v774 = vsel %vm757, 0, %v773
      %775 = vst [vmem:[#allocation3 + $0x28] sm:$0x80] %v774
      %v776 = vld [vmem:[#allocation3 + $0x30] sm:$0x80]
      %v777 = vsel %vm757, 0, %v776
      %778 = vst [vmem:[#allocation3 + $0x30] sm:$0x80] %v777
      %v779 = vld [vmem:[#allocation3 + $0x38] sm:$0x80]
      %v780 = vsel %vm757, 0, %v779
      %781 = vst [vmem:[#allocation3 + $0x38] sm:$0x80] %v780
      %v782 = vld [vmem:[#allocation3 + $0x40] sm:$0x80]
      %v783 = vsel %vm757, 0, %v782
      %784 = vst [vmem:[#allocation3 + $0x40] sm:$0x80] %v783
      %v785 = vld [vmem:[#allocation3 + $0x48] sm:$0x80]
      %v786 = vsel %vm757, 0, %v785
      %787 = vst [vmem:[#allocation3 + $0x48] sm:$0x80] %v786
      %v788 = vld [vmem:[#allocation3 + $0x50] sm:$0x80]
      %v789 = vsel %vm757, 0, %v788
      %790 = vst [vmem:[#allocation3 + $0x50] sm:$0x80] %v789
      %v791 = vld [vmem:[#allocation3 + $0x58] sm:$0x80]
      %v792 = vsel %vm757, 0, %v791
      %793 = vst [vmem:[#allocation3 + $0x58] sm:$0x80] %v792
      %v794 = vld [vmem:[#allocation3] sm:$0xff]
      %v795 = vld [vmem:[#allocation3 + $0x8] sm:$0xff]
      %v796 = vld [vmem:[#allocation3 + $0x10] sm:$0xff]
      %v797 = vld [vmem:[#allocation3 + $0x18] sm:$0xff]
      %v798 = vld [vmem:[#allocation3 + $0x20] sm:$0xff]
      %v799 = vld [vmem:[#allocation3 + $0x28] sm:$0xff]
      %v800 = vld [vmem:[#allocation3 + $0x30] sm:$0xff]
      %v801 = vld [vmem:[#allocation3 + $0x38] sm:$0xff]
      %v802 = vld [vmem:[#allocation3 + $0x40] sm:$0xff]
      %v803 = vld [vmem:[#allocation3 + $0x48] sm:$0xff]
      %v804 = vld [vmem:[%s1] sm:$0xf]
      %v805 = vld [vmem:[%s1 + $0x4] sm:$0x3]
      %s806 = scalar_lea.vmem [#allocation3], 8
      %v807 = vld [vmem:[%s806] sm:$0xff]
      %v808 = vld [vmem:[%s806 + $0x8] sm:$0xff]
      %v809 = vld [vmem:[%s806 + $0x10] sm:$0xff]
      %v810 = vld [vmem:[%s806 + $0x18] sm:$0xff]
      %v811 = vld [vmem:[%s806 + $0x20] sm:$0xff]
      %v812 = vld [vmem:[%s806 + $0x28] sm:$0xff]
      %v813 = vld [vmem:[%s806 + $0x30] sm:$0xff]
      %v814 = vld [vmem:[%s806 + $0x38] sm:$0xff]
      %v815 = vld [vmem:[%s806 + $0x40] sm:$0xff]
      %v816 = vld [vmem:[%s806 + $0x48] sm:$0xff]
      %s817 = scalar_lea.vmem %s1, 8
      %v818 = vld [vmem:[%s817] sm:$0xf]
      %v819 = vld [vmem:[%s817 + $0x4] sm:$0x3]
      %v822 = vunpack.c.l.b16 %v818
      %v823 = vunpack.c.l.b16 %v819
      %v824 = vpack.c.b16 %v823, %v822
      %vm825 = vcmask 97280
      %v827 = vsel %vm825, %v807, 0
      %v830 = vsel %vm825, %v808, 0
      %v833 = vsel %vm825, %v809, 0
      %v836 = vsel %vm825, %v810, 0
      %v839 = vsel %vm825, %v811, 0
      %v842 = vsel %vm825, %v812, 0
      %v845 = vsel %vm825, %v813, 0
      %v848 = vsel %vm825, %v814, 0
      %v851 = vsel %vm825, %v815, 0
      %v854 = vsel %vm825, %v816, 0
      %vm856 = vcmask 1045504
      %v858 = vsel %vm856, %v824, 0
      %860 = vmatprep.subr.bf16.mxu0 0
      %861 = vmatpush1.bf16.msra.mxu0 %v858
      %862 = vmatprep.subr.bf16.mxu0 0
      %863 = vmatpush1.bf16.msra.mxu0 0
      %864 = vmatprep.subr.bf16.mxu0 0
      %865 = vmatpush1.bf16.msra.mxu0 0
      %866 = vmatprep.subr.bf16.mxu0 0
      %867 = vmatpush1.bf16.msra.mxu0 0
      %868 = vmatprep.subr.bf16.mxu0 0
      %869 = vmatpush1.bf16.msra.mxu0 0
      %870 = vmatprep.subr.bf16.mxu0 0
      %871 = vmatpush1.bf16.msra.mxu0 0
      %872 = vmatprep.subr.bf16.mxu0 0
      %873 = vmatpush1.bf16.msra.mxu0 0
      %874 = vmatprep.subr.bf16.mxu0 0
      %875 = vmatpush1.bf16.msra.mxu0 0
      %876 = vmatprep.subr.bf16.mxu0 0
      %877 = vmatpush1.bf16.msra.mxu0 0
      %878 = vmatprep.subr.bf16.mxu0 0
      %879 = vmatpush1.bf16.msra.mxu0 0
      %880 = vmatprep.subr.bf16.mxu0 0
      %881 = vmatpush1.bf16.msra.mxu0 0
      %882 = vmatprep.subr.bf16.mxu0 0
      %883 = vmatpush1.bf16.msra.mxu0 0
      %884 = vmatprep.subr.bf16.mxu0 0
      %885 = vmatpush1.bf16.msra.mxu0 0
      %886 = vmatprep.subr.bf16.mxu0 0
      %887 = vmatpush1.bf16.msra.mxu0 0
      %888 = vmatprep.subr.bf16.mxu0 0
      %889 = vmatpush1.bf16.msra.mxu0 0
      %890 = vmatprep.subr.bf16.mxu0 0
      %891 = vmatpush1.bf16.msra.mxu0 0
      %892 = vmatprep.mubr.bf16.mxu0 0
      %893 = vmatmul.mubr.bf16.gmra.mrb[0].mxu0 %v827
      %v894 = vpop.f32.mrb[0].mxu0
      %v895 = vadd.f32 0.0, %v894
      %v896 = vpop.f32.mrb[0].mxu0
      %v897 = vpop.f32.mrb[0].mxu0
      %v898 = vadd.f32 0.0, %v897
      %v899 = vpop.f32.mrb[0].mxu0
      %900 = vmatprep.mubr.bf16.mxu0 0
      %901 = vmatmul.mubr.bf16.gmra.mrb[0].mxu0 %v830
      %v902 = vpop.f32.mrb[0].mxu0
      %v903 = vadd.f32 0.0, %v902
      %v904 = vpop.f32.mrb[0].mxu0
      %v905 = vpop.f32.mrb[0].mxu0
      %v906 = vadd.f32 0.0, %v905
      %v907 = vpop.f32.mrb[0].mxu0
      %908 = vmatprep.mubr.bf16.mxu0 0
      %909 = vmatmul.mubr.bf16.gmra.mrb[0].mxu0 %v833
      %v910 = vpop.f32.mrb[0].mxu0
      %v911 = vadd.f32 0.0, %v910
      %v912 = vpop.f32.mrb[0].mxu0
      %v913 = vpop.f32.mrb[0].mxu0
      %v914 = vadd.f32 0.0, %v913
      %v915 = vpop.f32.mrb[0].mxu0
      %916 = vmatprep.mubr.bf16.mxu0 0
      %917 = vmatmul.mubr.bf16.gmra.mrb[0].mxu0 %v836
      %v918 = vpop.f32.mrb[0].mxu0
      %v919 = vadd.f32 0.0, %v918
      %v920 = vpop.f32.mrb[0].mxu0
      %v921 = vpop.f32.mrb[0].mxu0
      %v922 = vadd.f32 0.0, %v921
      %v923 = vpop.f32.mrb[0].mxu0
      %924 = vmatprep.mubr.bf16.mxu0 0
      %925 = vmatmul.mubr.bf16.gmra.mrb[0].mxu0 %v839
      %v926 = vpop.f32.mrb[0].mxu0
      %v927 = vadd.f32 0.0, %v926
      %v928 = vpop.f32.mrb[0].mxu0
      %v929 = vpop.f32.mrb[0].mxu0
      %v930 = vadd.f32 0.0, %v929
      %v931 = vpop.f32.mrb[0].mxu0
      %932 = vmatprep.mubr.bf16.mxu0 0
      %933 = vmatmul.mubr.bf16.gmra.mrb[0].mxu0 %v842
      %v934 = vpop.f32.mrb[0].mxu0
      %v935 = vadd.f32 0.0, %v934
      %v936 = vpop.f32.mrb[0].mxu0
      %v937 = vpop.f32.mrb[0].mxu0
      %v938 = vadd.f32 0.0, %v937
      %v939 = vpop.f32.mrb[0].mxu0
      %940 = vmatprep.mubr.bf16.mxu0 0
      %941 = vmatmul.mubr.bf16.gmra.mrb[0].mxu0 %v845
      %v942 = vpop.f32.mrb[0].mxu0
      %v943 = vadd.f32 0.0, %v942
      %v944 = vpop.f32.mrb[0].mxu0
      %v945 = vpop.f32.mrb[0].mxu0
      %v946 = vadd.f32 0.0, %v945
      %v947 = vpop.f32.mrb[0].mxu0
      %948 = vmatprep.mubr.bf16.mxu0 0
      %949 = vmatmul.mubr.bf16.gmra.mrb[0].mxu0 %v848
      %v950 = vpop.f32.mrb[0].mxu0
      %v951 = vadd.f32 0.0, %v950
      %v952 = vpop.f32.mrb[0].mxu0
      %v953 = vpop.f32.mrb[0].mxu0
      %v954 = vadd.f32 0.0, %v953
      %v955 = vpop.f32.mrb[0].mxu0
      %956 = vmatprep.mubr.bf16.mxu0 0
      %957 = vmatmul.mubr.bf16.gmra.mrb[0].mxu0 %v851
      %v958 = vpop.f32.mrb[0].mxu0
      %v959 = vadd.f32 0.0, %v958
      %v960 = vpop.f32.mrb[0].mxu0
      %v961 = vpop.f32.mrb[0].mxu0
      %v962 = vadd.f32 0.0, %v961
      %v963 = vpop.f32.mrb[0].mxu0
      %964 = vmatprep.mubr.bf16.mxu0 0
      %965 = vmatmul.mubr.bf16.gmra.mrb[0].mxu0 %v854
      %v966 = vpop.f32.mrb[0].mxu0
      %v967 = vadd.f32 0.0, %v966
      %v968 = vpop.f32.mrb[0].mxu0
      %v969 = vpop.f32.mrb[0].mxu0
      %v970 = vadd.f32 0.0, %v969
      %v971 = vpop.f32.mrb[0].mxu0
      %972 = vdwg.mxu0
      %v975 = vunpack.c.l.b16 %v804
      %v976 = vunpack.c.l.b16 %v805
      %v977 = vpack.c.b16 %v976, %v975
      %v979 = vsel %vm825, %v794, 0
      %v982 = vsel %vm825, %v795, 0
      %v985 = vsel %vm825, %v796, 0
      %v988 = vsel %vm825, %v797, 0
      %v991 = vsel %vm825, %v798, 0
      %v994 = vsel %vm825, %v799, 0
      %v997 = vsel %vm825, %v800, 0
      %v1000 = vsel %vm825, %v801, 0
      %v1003 = vsel %vm825, %v802, 0
      %v1006 = vsel %vm825, %v803, 0
      %v1009 = vsel %vm856, %v977, 0
      %1011 = vmatprep.subr.bf16.mxu0 0
      %1012 = vmatpush1.bf16.msra.mxu0 %v1009
      %1013 = vmatprep.subr.bf16.mxu0 0
      %1014 = vmatpush1.bf16.msra.mxu0 0
      %1015 = vmatprep.subr.bf16.mxu0 0
      %1016 = vmatpush1.bf16.msra.mxu0 0
      %1017 = vmatprep.subr.bf16.mxu0 0
      %1018 = vmatpush1.bf16.msra.mxu0 0
      %1019 = vmatprep.subr.bf16.mxu0 0
      %1020 = vmatpush1.bf16.msra.mxu0 0
      %1021 = vmatprep.subr.bf16.mxu0 0
      %1022 = vmatpush1.bf16.msra.mxu0 0
      %1023 = vmatprep.subr.bf16.mxu0 0
      %1024 = vmatpush1.bf16.msra.mxu0 0
      %1025 = vmatprep.subr.bf16.mxu0 0
      %1026 = vmatpush1.bf16.msra.mxu0 0
      %1027 = vmatprep.subr.bf16.mxu0 0
      %1028 = vmatpush1.bf16.msra.mxu0 0
      %1029 = vmatprep.subr.bf16.mxu0 0
      %1030 = vmatpush1.bf16.msra.mxu0 0
      %1031 = vmatprep.subr.bf16.mxu0 0
      %1032 = vmatpush1.bf16.msra.mxu0 0
      %1033 = vmatprep.subr.bf16.mxu0 0
      %1034 = vmatpush1.bf16.msra.mxu0 0
      %1035 = vmatprep.subr.bf16.mxu0 0
      %1036 = vmatpush1.bf16.msra.mxu0 0
      %1037 = vmatprep.subr.bf16.mxu0 0
      %1038 = vmatpush1.bf16.msra.mxu0 0
      %1039 = vmatprep.subr.bf16.mxu0 0
      %1040 = vmatpush1.bf16.msra.mxu0 0
      %1041 = vmatprep.subr.bf16.mxu0 0
      %1042 = vmatpush1.bf16.msra.mxu0 0
      %1043 = vmatprep.mubr.bf16.mxu0 0
      %1044 = vmatmul.mubr.bf16.gmra.mrb[0].mxu0 %v979
      %v1045 = vpop.f32.mrb[0].mxu0
      %v1046 = vadd.f32 %v895, %v1045
      %v1047 = vpop.f32.mrb[0].mxu0
      %v1048 = vpop.f32.mrb[0].mxu0
      %v1049 = vadd.f32 %v898, %v1048
      %v1050 = vpop.f32.mrb[0].mxu0
      %1051 = vmatprep.mubr.bf16.mxu0 0
      %1052 = vmatmul.mubr.bf16.gmra.mrb[0].mxu0 %v982
      %v1053 = vpop.f32.mrb[0].mxu0
      %v1054 = vadd.f32 %v903, %v1053
      %v1055 = vpop.f32.mrb[0].mxu0
      %v1056 = vpop.f32.mrb[0].mxu0
      %v1057 = vadd.f32 %v906, %v1056
      %v1058 = vpop.f32.mrb[0].mxu0
      %1059 = vmatprep.mubr.bf16.mxu0 0
      %1060 = vmatmul.mubr.bf16.gmra.mrb[0].mxu0 %v985
      %v1061 = vpop.f32.mrb[0].mxu0
      %v1062 = vadd.f32 %v911, %v1061
      %v1063 = vpop.f32.mrb[0].mxu0
      %v1064 = vpop.f32.mrb[0].mxu0
      %v1065 = vadd.f32 %v914, %v1064
      %v1066 = vpop.f32.mrb[0].mxu0
      %1067 = vmatprep.mubr.bf16.mxu0 0
      %1068 = vmatmul.mubr.bf16.gmra.mrb[0].mxu0 %v988
      %v1069 = vpop.f32.mrb[0].mxu0
      %v1070 = vadd.f32 %v919, %v1069
      %v1071 = vpop.f32.mrb[0].mxu0
      %v1072 = vpop.f32.mrb[0].mxu0
      %v1073 = vadd.f32 %v922, %v1072
      %v1074 = vpop.f32.mrb[0].mxu0
      %1075 = vmatprep.mubr.bf16.mxu0 0
      %1076 = vmatmul.mubr.bf16.gmra.mrb[0].mxu0 %v991
      %v1077 = vpop.f32.mrb[0].mxu0
      %v1078 = vadd.f32 %v927, %v1077
      %v1079 = vpop.f32.mrb[0].mxu0
      %v1080 = vpop.f32.mrb[0].mxu0
      %v1081 = vadd.f32 %v930, %v1080
      %v1082 = vpop.f32.mrb[0].mxu0
      %1083 = vmatprep.mubr.bf16.mxu0 0
      %1084 = vmatmul.mubr.bf16.gmra.mrb[0].mxu0 %v994
      %v1085 = vpop.f32.mrb[0].mxu0
      %v1086 = vadd.f32 %v935, %v1085
      %v1087 = vpop.f32.mrb[0].mxu0
      %v1088 = vpop.f32.mrb[0].mxu0
      %v1089 = vadd.f32 %v938, %v1088
      %v1090 = vpop.f32.mrb[0].mxu0
      %1091 = vmatprep.mubr.bf16.mxu0 0
      %1092 = vmatmul.mubr.bf16.gmra.mrb[0].mxu0 %v997
      %v1093 = vpop.f32.mrb[0].mxu0
      %v1094 = vadd.f32 %v943, %v1093
      %v1095 = vpop.f32.mrb[0].mxu0
      %v1096 = vpop.f32.mrb[0].mxu0
      %v1097 = vadd.f32 %v946, %v1096
      %v1098 = vpop.f32.mrb[0].mxu0
      %1099 = vmatprep.mubr.bf16.mxu0 0
      %1100 = vmatmul.mubr.bf16.gmra.mrb[0].mxu0 %v1000
      %v1101 = vpop.f32.mrb[0].mxu0
      %v1102 = vadd.f32 %v951, %v1101
      %v1103 = vpop.f32.mrb[0].mxu0
      %v1104 = vpop.f32.mrb[0].mxu0
      %v1105 = vadd.f32 %v954, %v1104
      %v1106 = vpop.f32.mrb[0].mxu0
      %1107 = vmatprep.mubr.bf16.mxu0 0
      %1108 = vmatmul.mubr.bf16.gmra.mrb[0].mxu0 %v1003
      %v1109 = vpop.f32.mrb[0].mxu0
      %v1110 = vadd.f32 %v959, %v1109
      %v1111 = vpop.f32.mrb[0].mxu0
      %v1112 = vpop.f32.mrb[0].mxu0
      %v1113 = vadd.f32 %v962, %v1112
      %v1114 = vpop.f32.mrb[0].mxu0
      %1115 = vmatprep.mubr.bf16.mxu0 0
      %1116 = vmatmul.mubr.bf16.gmra.mrb[0].mxu0 %v1006
      %v1117 = vpop.f32.mrb[0].mxu0
      %v1118 = vadd.f32 %v967, %v1117
      %v1119 = vpop.f32.mrb[0].mxu0
      %v1120 = vpop.f32.mrb[0].mxu0
      %v1121 = vadd.f32 %v970, %v1120
      %v1122 = vpop.f32.mrb[0].mxu0
      %1123 = vdwg.mxu0
      %s1124 = scalar_lea.vmem [#allocation3], 16
      %v1125 = vld [vmem:[%s1124] sm:$0xff]
      %v1126 = vld [vmem:[%s1124 + $0x8] sm:$0xff]
      %v1127 = vld [vmem:[%s1124 + $0x10] sm:$0xff]
      %v1128 = vld [vmem:[%s1124 + $0x18] sm:$0xff]
      %v1129 = vld [vmem:[%s1124 + $0x20] sm:$0xff]
      %v1130 = vld [vmem:[%s1124 + $0x28] sm:$0xff]
      %v1131 = vld [vmem:[%s1124 + $0x30] sm:$0xff]
      %v1132 = vld [vmem:[%s1124 + $0x38] sm:$0xff]
      %v1133 = vld [vmem:[%s1124 + $0x40] sm:$0xff]
      %v1134 = vld [vmem:[%s1124 + $0x48] sm:$0xff]
      %s1135 = scalar_lea.vmem %s1, 16
      %v1136 = vld [vmem:[%s1135] sm:$0xf]
      %v1137 = vld [vmem:[%s1135 + $0x4] sm:$0x3]
      %v1140 = vunpack.c.l.b16 %v1136
      %v1141 = vunpack.c.l.b16 %v1137
      %v1142 = vpack.c.b16 %v1141, %v1140
      %v1144 = vsel %vm825, %v1125, 0
      %v1147 = vsel %vm825, %v1126, 0
      %v1150 = vsel %vm825, %v1127, 0
      %v1153 = vsel %vm825, %v1128, 0
      %v1156 = vsel %vm825, %v1129, 0
      %v1159 = vsel %vm825, %v1130, 0
      %v1162 = vsel %vm825, %v1131, 0
      %v1165 = vsel %vm825, %v1132, 0
      %v1168 = vsel %vm825, %v1133, 0
      %v1171 = vsel %vm825, %v1134, 0
      %v1174 = vsel %vm856, %v1142, 0
      %1176 = vmatprep.subr.bf16.mxu0 0
      %1177 = vmatpush1.bf16.msra.mxu0 %v1174
      %1178 = vmatprep.subr.bf16.mxu0 0
      %1179 = vmatpush1.bf16.msra.mxu0 0
      %1180 = vmatprep.subr.bf16.mxu0 0
      %1181 = vmatpush1.bf16.msra.mxu0 0
      %1182 = vmatprep.subr.bf16.mxu0 0
      %1183 = vmatpush1.bf16.msra.mxu0 0
      %1184 = vmatprep.subr.bf16.mxu0 0
      %1185 = vmatpush1.bf16.msra.mxu0 0
      %1186 = vmatprep.subr.bf16.mxu0 0
      %1187 = vmatpush1.bf16.msra.mxu0 0
      %1188 = vmatprep.subr.bf16.mxu0 0
      %1189 = vmatpush1.bf16.msra.mxu0 0
      %1190 = vmatprep.subr.bf16.mxu0 0
      %1191 = vmatpush1.bf16.msra.mxu0 0
      %1192 = vmatprep.subr.bf16.mxu0 0
      %1193 = vmatpush1.bf16.msra.mxu0 0
      %1194 = vmatprep.subr.bf16.mxu0 0
      %1195 = vmatpush1.bf16.msra.mxu0 0
      %1196 = vmatprep.subr.bf16.mxu0 0
      %1197 = vmatpush1.bf16.msra.mxu0 0
      %1198 = vmatprep.subr.bf16.mxu0 0
      %1199 = vmatpush1.bf16.msra.mxu0 0
      %1200 = vmatprep.subr.bf16.mxu0 0
      %1201 = vmatpush1.bf16.msra.mxu0 0
      %1202 = vmatprep.subr.bf16.mxu0 0
      %1203 = vmatpush1.bf16.msra.mxu0 0
      %1204 = vmatprep.subr.bf16.mxu0 0
      %1205 = vmatpush1.bf16.msra.mxu0 0
      %1206 = vmatprep.subr.bf16.mxu0 0
      %1207 = vmatpush1.bf16.msra.mxu0 0
      %1208 = vmatprep.mubr.bf16.mxu0 0
      %1209 = vmatmul.mubr.bf16.gmra.mrb[0].mxu0 %v1144
      %v1210 = vpop.f32.mrb[0].mxu0
      %v1211 = vadd.f32 0.0, %v1210
      %v1212 = vpop.f32.mrb[0].mxu0
      %v1213 = vpop.f32.mrb[0].mxu0
      %v1214 = vadd.f32 0.0, %v1213
      %v1215 = vpop.f32.mrb[0].mxu0
      %1216 = vmatprep.mubr.bf16.mxu0 0
      %1217 = vmatmul.mubr.bf16.gmra.mrb[0].mxu0 %v1147
      %v1218 = vpop.f32.mrb[0].mxu0
      %v1219 = vadd.f32 0.0, %v1218
      %v1220 = vpop.f32.mrb[0].mxu0
      %v1221 = vpop.f32.mrb[0].mxu0
      %v1222 = vadd.f32 0.0, %v1221
      %v1223 = vpop.f32.mrb[0].mxu0
      %1224 = vmatprep.mubr.bf16.mxu0 0
      %1225 = vmatmul.mubr.bf16.gmra.mrb[0].mxu0 %v1150
      %v1226 = vpop.f32.mrb[0].mxu0
      %v1227 = vadd.f32 0.0, %v1226
      %v1228 = vpop.f32.mrb[0].mxu0
      %v1229 = vpop.f32.mrb[0].mxu0
      %v1230 = vadd.f32 0.0, %v1229
      %v1231 = vpop.f32.mrb[0].mxu0
      %1232 = vmatprep.mubr.bf16.mxu0 0
      %1233 = vmatmul.mubr.bf16.gmra.mrb[0].mxu0 %v1153
      %v1234 = vpop.f32.mrb[0].mxu0
      %v1235 = vadd.f32 0.0, %v1234
      %v1236 = vpop.f32.mrb[0].mxu0
      %v1237 = vpop.f32.mrb[0].mxu0
      %v1238 = vadd.f32 0.0, %v1237
      %v1239 = vpop.f32.mrb[0].mxu0
      %1240 = vmatprep.mubr.bf16.mxu0 0
      %1241 = vmatmul.mubr.bf16.gmra.mrb[0].mxu0 %v1156
      %v1242 = vpop.f32.mrb[0].mxu0
      %v1243 = vadd.f32 0.0, %v1242
      %v1244 = vpop.f32.mrb[0].mxu0
      %v1245 = vpop.f32.mrb[0].mxu0
      %v1246 = vadd.f32 0.0, %v1245
      %v1247 = vpop.f32.mrb[0].mxu0
      %1248 = vmatprep.mubr.bf16.mxu0 0
      %1249 = vmatmul.mubr.bf16.gmra.mrb[0].mxu0 %v1159
      %v1250 = vpop.f32.mrb[0].mxu0
      %v1251 = vadd.f32 0.0, %v1250
      %v1252 = vpop.f32.mrb[0].mxu0
      %v1253 = vpop.f32.mrb[0].mxu0
      %v1254 = vadd.f32 0.0, %v1253
      %v1255 = vpop.f32.mrb[0].mxu0
      %1256 = vmatprep.mubr.bf16.mxu0 0
      %1257 = vmatmul.mubr.bf16.gmra.mrb[0].mxu0 %v1162
      %v1258 = vpop.f32.mrb[0].mxu0
      %v1259 = vadd.f32 0.0, %v1258
      %v1260 = vpop.f32.mrb[0].mxu0
      %v1261 = vpop.f32.mrb[0].mxu0
      %v1262 = vadd.f32 0.0, %v1261
      %v1263 = vpop.f32.mrb[0].mxu0
      %1264 = vmatprep.mubr.bf16.mxu0 0
      %1265 = vmatmul.mubr.bf16.gmra.mrb[0].mxu0 %v1165
      %v1266 = vpop.f32.mrb[0].mxu0
      %v1267 = vadd.f32 0.0, %v1266
      %v1268 = vpop.f32.mrb[0].mxu0
      %v1269 = vpop.f32.mrb[0].mxu0
      %v1270 = vadd.f32 0.0, %v1269
      %v1271 = vpop.f32.mrb[0].mxu0
      %1272 = vmatprep.mubr.bf16.mxu0 0
      %1273 = vmatmul.mubr.bf16.gmra.mrb[0].mxu0 %v1168
      %v1274 = vpop.f32.mrb[0].mxu0
      %v1275 = vadd.f32 0.0, %v1274
      %v1276 = vpop.f32.mrb[0].mxu0
      %v1277 = vpop.f32.mrb[0].mxu0
      %v1278 = vadd.f32 0.0, %v1277
      %v1279 = vpop.f32.mrb[0].mxu0
      %1280 = vmatprep.mubr.bf16.mxu0 0
      %1281 = vmatmul.mubr.bf16.gmra.mrb[0].mxu0 %v1171
      %v1282 = vpop.f32.mrb[0].mxu0
      %v1283 = vadd.f32 0.0, %v1282
      %v1284 = vpop.f32.mrb[0].mxu0
      %v1285 = vpop.f32.mrb[0].mxu0
      %v1286 = vadd.f32 0.0, %v1285
      %v1287 = vpop.f32.mrb[0].mxu0
      %1288 = vdwg.mxu0
      %v1289 = vadd.f32 %v1046, %v1211
      %v1290 = vadd.f32 %v1049, %v1214
      %v1291 = vadd.f32 %v1054, %v1219
      %v1292 = vadd.f32 %v1057, %v1222
      %v1293 = vadd.f32 %v1062, %v1227
      %v1294 = vadd.f32 %v1065, %v1230
      %v1295 = vadd.f32 %v1070, %v1235
      %v1296 = vadd.f32 %v1073, %v1238
      %v1297 = vadd.f32 %v1078, %v1243
      %v1298 = vadd.f32 %v1081, %v1246
      %v1299 = vadd.f32 %v1086, %v1251
      %v1300 = vadd.f32 %v1089, %v1254
      %v1301 = vadd.f32 %v1094, %v1259
      %v1302 = vadd.f32 %v1097, %v1262
      %v1303 = vadd.f32 %v1102, %v1267
      %v1304 = vadd.f32 %v1105, %v1270
      %v1305 = vadd.f32 %v1110, %v1275
      %v1306 = vadd.f32 %v1113, %v1278
      %v1307 = vadd.f32 %v1118, %v1283
      %v1308 = vadd.f32 %v1121, %v1286
      %v1309 = vld [vmem:[%s2] sm:$0x1]
      %v1311 = vlaneseq
      %v1312 = vshrl.u32 %v1311, 7
      %v1313 = vsub.s32 0, %v1312
      %v1314 = vrot.slane %v1309, %v1313
      %v1316 = vadd.f32 %v1289, %v1314
      %v1317 = vadd.f32 %v1290, %v1314
      %v1318 = vadd.f32 %v1291, %v1314
      %v1319 = vadd.f32 %v1292, %v1314
      %v1320 = vadd.f32 %v1293, %v1314
      %v1321 = vadd.f32 %v1294, %v1314
      %v1322 = vadd.f32 %v1295, %v1314
      %v1323 = vadd.f32 %v1296, %v1314
      %v1324 = vadd.f32 %v1297, %v1314
      %v1325 = vadd.f32 %v1298, %v1314
      %v1326 = vadd.f32 %v1299, %v1314
      %v1327 = vadd.f32 %v1300, %v1314
      %v1328 = vadd.f32 %v1301, %v1314
      %v1329 = vadd.f32 %v1302, %v1314
      %v1330 = vadd.f32 %v1303, %v1314
      %v1331 = vadd.f32 %v1304, %v1314
      %v1332 = vadd.f32 %v1305, %v1314
      %v1333 = vadd.f32 %v1306, %v1314
      %v1334 = vadd.f32 %v1307, %v1314
      %v1335 = vadd.f32 %v1308, %v1314
      %v1336 = vmax.f32 %v1316, 0.0
      %v1337 = vmax.f32 %v1317, 0.0
      %v1338 = vmax.f32 %v1318, 0.0
      %v1339 = vmax.f32 %v1319, 0.0
      %v1340 = vmax.f32 %v1320, 0.0
      %v1341 = vmax.f32 %v1321, 0.0
      %v1342 = vmax.f32 %v1322, 0.0
      %v1343 = vmax.f32 %v1323, 0.0
      %v1344 = vmax.f32 %v1324, 0.0
      %v1345 = vmax.f32 %v1325, 0.0
      %v1346 = vmax.f32 %v1326, 0.0
      %v1347 = vmax.f32 %v1327, 0.0
      %v1348 = vmax.f32 %v1328, 0.0
      %v1349 = vmax.f32 %v1329, 0.0
      %v1350 = vmax.f32 %v1330, 0.0
      %v1351 = vmax.f32 %v1331, 0.0
      %v1352 = vmax.f32 %v1332, 0.0
      %v1353 = vmax.f32 %v1333, 0.0
      %v1354 = vmax.f32 %v1334, 0.0
      %v1355 = vmax.f32 %v1335, 0.0
      %v1356 = vpack.c.bf16 %v1337, %v1336
      %v1357 = vpack.c.bf16 %v1339, %v1338
      %v1358 = vpack.c.bf16 %v1341, %v1340
      %v1359 = vpack.c.bf16 %v1343, %v1342
      %v1360 = vpack.c.bf16 %v1345, %v1344
      %v1361 = vpack.c.bf16 %v1347, %v1346
      %v1362 = vpack.c.bf16 %v1349, %v1348
      %v1363 = vpack.c.bf16 %v1351, %v1350
      %v1364 = vpack.c.bf16 %v1353, %v1352
      %v1365 = vpack.c.bf16 %v1355, %v1354
      %1376 = vrot.lane.b32.xlu0 %v1356, 4
      %v1377 = vpop.permute.xlu0 %1376
      %1378 = vrot.lane.b32.xlu0 %v1357, 4
      %v1379 = vpop.permute.xlu0 %1378
      %1380 = vrot.lane.b32.xlu0 %v1358, 4
      %v1381 = vpop.permute.xlu0 %1380
      %1382 = vrot.lane.b32.xlu0 %v1359, 4
      %v1383 = vpop.permute.xlu0 %1382
      %1384 = vrot.lane.b32.xlu0 %v1360, 4
      %v1385 = vpop.permute.xlu0 %1384
      %1386 = vrot.lane.b32.xlu0 %v1361, 4
      %v1387 = vpop.permute.xlu0 %1386
      %1388 = vrot.lane.b32.xlu0 %v1362, 4
      %v1389 = vpop.permute.xlu0 %1388
      %1390 = vrot.lane.b32.xlu0 %v1363, 4
      %v1391 = vpop.permute.xlu0 %1390
      %1392 = vrot.lane.b32.xlu0 %v1364, 4
      %v1393 = vpop.permute.xlu0 %1392
      %1394 = vrot.lane.b32.xlu0 %v1365, 4
      %v1395 = vpop.permute.xlu0 %1394
      %1406 = vst.msk [vmem:[#allocation4] sm:$0xff] %vm469, %v1377
      %1407 = vst.msk [vmem:[#allocation4 + $0x8] sm:$0xff] %vm469, %v1379
      %1408 = vst.msk [vmem:[#allocation4 + $0x10] sm:$0xff] %vm469, %v1381
      %1409 = vst.msk [vmem:[#allocation4 + $0x18] sm:$0xff] %vm469, %v1383
      %1410 = vst.msk [vmem:[#allocation4 + $0x20] sm:$0xff] %vm469, %v1385
      %1411 = vst.msk [vmem:[#allocation4 + $0x28] sm:$0xff] %vm469, %v1387
      %1412 = vst.msk [vmem:[#allocation4 + $0x30] sm:$0xff] %vm469, %v1389
      %1413 = vst.msk [vmem:[#allocation4 + $0x38] sm:$0xff] %vm469, %v1391
      %1414 = vst.msk [vmem:[#allocation4 + $0x40] sm:$0xff] %vm469, %v1393
      %1415 = vst.msk [vmem:[#allocation4 + $0x48] sm:$0xff] %vm469, %v1395
      %v1417 = vshrl.u32 %v1356, 16
      %v1419 = vrot.slane %v1417, 7
      %v1420 = vshll.u32 %v1356, 16
      %v1422 = vor.u32 %v1419, %v1420
      %v1424 = vshrl.u32 %v1357, 16
      %v1426 = vrot.slane %v1424, 7
      %v1427 = vshll.u32 %v1357, 16
      %v1429 = vor.u32 %v1426, %v1427
      %v1431 = vshrl.u32 %v1358, 16
      %v1433 = vrot.slane %v1431, 7
      %v1434 = vshll.u32 %v1358, 16
      %v1436 = vor.u32 %v1433, %v1434
      %v1438 = vshrl.u32 %v1359, 16
      %v1440 = vrot.slane %v1438, 7
      %v1441 = vshll.u32 %v1359, 16
      %v1443 = vor.u32 %v1440, %v1441
      %v1445 = vshrl.u32 %v1360, 16
      %v1447 = vrot.slane %v1445, 7
      %v1448 = vshll.u32 %v1360, 16
      %v1450 = vor.u32 %v1447, %v1448
      %v1452 = vshrl.u32 %v1361, 16
      %v1454 = vrot.slane %v1452, 7
      %v1455 = vshll.u32 %v1361, 16
      %v1457 = vor.u32 %v1454, %v1455
      %v1459 = vshrl.u32 %v1362, 16
      %v1461 = vrot.slane %v1459, 7
      %v1462 = vshll.u32 %v1362, 16
      %v1464 = vor.u32 %v1461, %v1462
      %v1466 = vshrl.u32 %v1363, 16
      %v1468 = vrot.slane %v1466, 7
      %v1469 = vshll.u32 %v1363, 16
      %v1471 = vor.u32 %v1468, %v1469
      %v1473 = vshrl.u32 %v1364, 16
      %v1475 = vrot.slane %v1473, 7
      %v1476 = vshll.u32 %v1364, 16
      %v1478 = vor.u32 %v1475, %v1476
      %v1480 = vshrl.u32 %v1365, 16
      %v1482 = vrot.slane %v1480, 7
      %v1483 = vshll.u32 %v1365, 16
      %v1485 = vor.u32 %v1482, %v1483
      %v1496 = vld [vmem:[#allocation4] sm:$0xff]
      %v1497 = vsel %vm580, %v1422, %v1496
      %1498 = vst [vmem:[#allocation4] sm:$0xff] %v1497
      %v1499 = vld [vmem:[#allocation4 + $0x8] sm:$0xff]
      %v1500 = vsel %vm580, %v1429, %v1499
      %1501 = vst [vmem:[#allocation4 + $0x8] sm:$0xff] %v1500
      %v1502 = vld [vmem:[#allocation4 + $0x10] sm:$0xff]
      %v1503 = vsel %vm580, %v1436, %v1502
      %1504 = vst [vmem:[#allocation4 + $0x10] sm:$0xff] %v1503
      %v1505 = vld [vmem:[#allocation4 + $0x18] sm:$0xff]
      %v1506 = vsel %vm580, %v1443, %v1505
      %1507 = vst [vmem:[#allocation4 + $0x18] sm:$0xff] %v1506
      %v1508 = vld [vmem:[#allocation4 + $0x20] sm:$0xff]
      %v1509 = vsel %vm580, %v1450, %v1508
      %1510 = vst [vmem:[#allocation4 + $0x20] sm:$0xff] %v1509
      %v1511 = vld [vmem:[#allocation4 + $0x28] sm:$0xff]
      %v1512 = vsel %vm580, %v1457, %v1511
      %1513 = vst [vmem:[#allocation4 + $0x28] sm:$0xff] %v1512
      %v1514 = vld [vmem:[#allocation4 + $0x30] sm:$0xff]
      %v1515 = vsel %vm580, %v1464, %v1514
      %1516 = vst [vmem:[#allocation4 + $0x30] sm:$0xff] %v1515
      %v1517 = vld [vmem:[#allocation4 + $0x38] sm:$0xff]
      %v1518 = vsel %vm580, %v1471, %v1517
      %1519 = vst [vmem:[#allocation4 + $0x38] sm:$0xff] %v1518
      %v1520 = vld [vmem:[#allocation4 + $0x40] sm:$0xff]
      %v1521 = vsel %vm580, %v1478, %v1520
      %1522 = vst [vmem:[#allocation4 + $0x40] sm:$0xff] %v1521
      %v1523 = vld [vmem:[#allocation4 + $0x48] sm:$0xff]
      %v1524 = vsel %vm580, %v1485, %v1523
      %1525 = vst [vmem:[#allocation4 + $0x48] sm:$0xff] %v1524
      %v1526 = vld [vmem:[#allocation4] sm:$0x1]
      %v1527 = vsel %vm619, 0, %v1526
      %1528 = vst [vmem:[#allocation4] sm:$0x1] %v1527
      %v1529 = vld [vmem:[#allocation4 + $0x8] sm:$0x1]
      %v1530 = vsel %vm619, 0, %v1529
      %1531 = vst [vmem:[#allocation4 + $0x8] sm:$0x1] %v1530
      %v1532 = vld [vmem:[#allocation4 + $0x10] sm:$0x1]
      %v1533 = vsel %vm619, 0, %v1532
      %1534 = vst [vmem:[#allocation4 + $0x10] sm:$0x1] %v1533
      %v1535 = vld [vmem:[#allocation4 + $0x18] sm:$0x1]
      %v1536 = vsel %vm619, 0, %v1535
      %1537 = vst [vmem:[#allocation4 + $0x18] sm:$0x1] %v1536
      %v1538 = vld [vmem:[#allocation4 + $0x20] sm:$0x1]
      %v1539 = vsel %vm619, 0, %v1538
      %1540 = vst [vmem:[#allocation4 + $0x20] sm:$0x1] %v1539
      %v1541 = vld [vmem:[#allocation4 + $0x28] sm:$0x1]
      %v1542 = vsel %vm619, 0, %v1541
      %1543 = vst [vmem:[#allocation4 + $0x28] sm:$0x1] %v1542
      %v1544 = vld [vmem:[#allocation4 + $0x30] sm:$0x1]
      %v1545 = vsel %vm619, 0, %v1544
      %1546 = vst [vmem:[#allocation4 + $0x30] sm:$0x1] %v1545
      %v1547 = vld [vmem:[#allocation4 + $0x38] sm:$0x1]
      %v1548 = vsel %vm619, 0, %v1547
      %1549 = vst [vmem:[#allocation4 + $0x38] sm:$0x1] %v1548
      %v1550 = vld [vmem:[#allocation4 + $0x40] sm:$0x1]
      %v1551 = vsel %vm619, 0, %v1550
      %1552 = vst [vmem:[#allocation4 + $0x40] sm:$0x1] %v1551
      %v1553 = vld [vmem:[#allocation4 + $0x48] sm:$0x1]
      %v1554 = vsel %vm619, 0, %v1553
      %1555 = vst [vmem:[#allocation4 + $0x48] sm:$0x1] %v1554
      %v1556 = vrot.slane %v1420, 1
      %v1557 = vor.u32 %v1417, %v1556
      %v1558 = vrot.slane %v1427, 1
      %v1559 = vor.u32 %v1424, %v1558
      %v1560 = vrot.slane %v1434, 1
      %v1561 = vor.u32 %v1431, %v1560
      %v1562 = vrot.slane %v1441, 1
      %v1563 = vor.u32 %v1438, %v1562
      %v1564 = vrot.slane %v1448, 1
      %v1565 = vor.u32 %v1445, %v1564
      %v1566 = vrot.slane %v1455, 1
      %v1567 = vor.u32 %v1452, %v1566
      %v1568 = vrot.slane %v1462, 1
      %v1569 = vor.u32 %v1459, %v1568
      %v1570 = vrot.slane %v1469, 1
      %v1571 = vor.u32 %v1466, %v1570
      %v1572 = vrot.slane %v1476, 1
      %v1573 = vor.u32 %v1473, %v1572
      %v1574 = vrot.slane %v1483, 1
      %v1575 = vor.u32 %v1480, %v1574
      %1576 = vrot.lane.b32.xlu0 %v1557, 8
      %v1577 = vpop.permute.xlu0 %1576
      %1578 = vrot.lane.b32.xlu0 %v1559, 8
      %v1579 = vpop.permute.xlu0 %1578
      %1580 = vrot.lane.b32.xlu0 %v1561, 8
      %v1581 = vpop.permute.xlu0 %1580
      %1582 = vrot.lane.b32.xlu0 %v1563, 8
      %v1583 = vpop.permute.xlu0 %1582
      %1584 = vrot.lane.b32.xlu0 %v1565, 8
      %v1585 = vpop.permute.xlu0 %1584
      %1586 = vrot.lane.b32.xlu0 %v1567, 8
      %v1587 = vpop.permute.xlu0 %1586
      %1588 = vrot.lane.b32.xlu0 %v1569, 8
      %v1589 = vpop.permute.xlu0 %1588
      %1590 = vrot.lane.b32.xlu0 %v1571, 8
      %v1591 = vpop.permute.xlu0 %1590
      %1592 = vrot.lane.b32.xlu0 %v1573, 8
      %v1593 = vpop.permute.xlu0 %1592
      %1594 = vrot.lane.b32.xlu0 %v1575, 8
      %v1595 = vpop.permute.xlu0 %1594
      %v1606 = vld [vmem:[#allocation4] sm:$0xff]
      %v1607 = vsel %vm718, %v1577, %v1606
      %1608 = vst [vmem:[#allocation4] sm:$0xff] %v1607
      %v1609 = vld [vmem:[#allocation4 + $0x8] sm:$0xff]
      %v1610 = vsel %vm718, %v1579, %v1609
      %1611 = vst [vmem:[#allocation4 + $0x8] sm:$0xff] %v1610
      %v1612 = vld [vmem:[#allocation4 + $0x10] sm:$0xff]
      %v1613 = vsel %vm718, %v1581, %v1612
      %1614 = vst [vmem:[#allocation4 + $0x10] sm:$0xff] %v1613
      %v1615 = vld [vmem:[#allocation4 + $0x18] sm:$0xff]
      %v1616 = vsel %vm718, %v1583, %v1615
      %1617 = vst [vmem:[#allocation4 + $0x18] sm:$0xff] %v1616
      %v1618 = vld [vmem:[#allocation4 + $0x20] sm:$0xff]
      %v1619 = vsel %vm718, %v1585, %v1618
      %1620 = vst [vmem:[#allocation4 + $0x20] sm:$0xff] %v1619
      %v1621 = vld [vmem:[#allocation4 + $0x28] sm:$0xff]
      %v1622 = vsel %vm718, %v1587, %v1621
      %1623 = vst [vmem:[#allocation4 + $0x28] sm:$0xff] %v1622
      %v1624 = vld [vmem:[#allocation4 + $0x30] sm:$0xff]
      %v1625 = vsel %vm718, %v1589, %v1624
      %1626 = vst [vmem:[#allocation4 + $0x30] sm:$0xff] %v1625
      %v1627 = vld [vmem:[#allocation4 + $0x38] sm:$0xff]
      %v1628 = vsel %vm718, %v1591, %v1627
      %1629 = vst [vmem:[#allocation4 + $0x38] sm:$0xff] %v1628
      %v1630 = vld [vmem:[#allocation4 + $0x40] sm:$0xff]
      %v1631 = vsel %vm718, %v1593, %v1630
      %1632 = vst [vmem:[#allocation4 + $0x40] sm:$0xff] %v1631
      %v1633 = vld [vmem:[#allocation4 + $0x48] sm:$0xff]
      %v1634 = vsel %vm718, %v1595, %v1633
      %1635 = vst [vmem:[#allocation4 + $0x48] sm:$0xff] %v1634
      %v1636 = vld [vmem:[#allocation4] sm:$0x80]
      %v1637 = vsel %vm757, 0, %v1636
      %1638 = vst [vmem:[#allocation4] sm:$0x80] %v1637
      %v1639 = vld [vmem:[#allocation4 + $0x8] sm:$0x80]
      %v1640 = vsel %vm757, 0, %v1639
      %1641 = vst [vmem:[#allocation4 + $0x8] sm:$0x80] %v1640
      %v1642 = vld [vmem:[#allocation4 + $0x10] sm:$0x80]
      %v1643 = vsel %vm757, 0, %v1642
      %1644 = vst [vmem:[#allocation4 + $0x10] sm:$0x80] %v1643
      %v1645 = vld [vmem:[#allocation4 + $0x18] sm:$0x80]
      %v1646 = vsel %vm757, 0, %v1645
      %1647 = vst [vmem:[#allocation4 + $0x18] sm:$0x80] %v1646
      %v1648 = vld [vmem:[#allocation4 + $0x20] sm:$0x80]
      %v1649 = vsel %vm757, 0, %v1648
      %1650 = vst [vmem:[#allocation4 + $0x20] sm:$0x80] %v1649
      %v1651 = vld [vmem:[#allocation4 + $0x28] sm:$0x80]
      %v1652 = vsel %vm757, 0, %v1651
      %1653 = vst [vmem:[#allocation4 + $0x28] sm:$0x80] %v1652
      %v1654 = vld [vmem:[#allocation4 + $0x30] sm:$0x80]
      %v1655 = vsel %vm757, 0, %v1654
      %1656 = vst [vmem:[#allocation4 + $0x30] sm:$0x80] %v1655
      %v1657 = vld [vmem:[#allocation4 + $0x38] sm:$0x80]
      %v1658 = vsel %vm757, 0, %v1657
      %1659 = vst [vmem:[#allocation4 + $0x38] sm:$0x80] %v1658
      %v1660 = vld [vmem:[#allocation4 + $0x40] sm:$0x80]
      %v1661 = vsel %vm757, 0, %v1660
      %1662 = vst [vmem:[#allocation4 + $0x40] sm:$0x80] %v1661
      %v1663 = vld [vmem:[#allocation4 + $0x48] sm:$0x80]
      %v1664 = vsel %vm757, 0, %v1663
      %1665 = vst [vmem:[#allocation4 + $0x48] sm:$0x80] %v1664
      // Predicated region
      $region45: #{basic_block_forward.1} parent=39 // pred_check
        %p1666 = pneg %p252
      $region46: #{basic_block_forward.1} parent=39 // pred_check_branch
        %1668 = sbr.rel (%p1666) target = $region48
      $region47: #{basic_block_forward.1} parent=39 // pred_region
        %1669 = vst.msk [vmem:[#allocation4] sm:$0xff] %vm825, 0
      $region48: #{basic_block_forward.1} parent=39 // pred_fallthru
        _
      %p1670 = scmp.eq.s32.totalorder %s21, 1
      // Predicated region
      $region49: #{basic_block_forward.1} parent=39 // pred_check
        %p1671 = pneg %p1670
      $region50: #{basic_block_forward.1} parent=39 // pred_check_branch
        %1673 = sbr.rel (%p1671) target = $region52
      $region51: #{basic_block_forward.1} parent=39 // pred_region
        %s1674 = scalar_lea.vmem [#allocation4], 72
        %1675 = vst.msk [vmem:[%s1674] sm:$0xff] %vm825, 0
      $region52: #{basic_block_forward.1} parent=39 // pred_fallthru
        _
      %v1676 = vld [vmem:[#allocation4] sm:$0xff]
      %v1677 = vld [vmem:[#allocation4 + $0x8] sm:$0xff]
      %v1678 = vld [vmem:[#allocation4 + $0x10] sm:$0xff]
      %v1679 = vld [vmem:[#allocation4 + $0x18] sm:$0xff]
      %v1680 = vld [vmem:[#allocation4 + $0x20] sm:$0xff]
      %v1681 = vld [vmem:[#allocation4 + $0x28] sm:$0xff]
      %v1682 = vld [vmem:[#allocation4 + $0x30] sm:$0xff]
      %v1683 = vld [vmem:[#allocation4 + $0x38] sm:$0xff]
      %v1684 = vld [vmem:[%s3] sm:$0xf]
      %v1685 = vld [vmem:[%s3 + $0x4] sm:$0x3]
      %s1686 = scalar_lea.vmem [#allocation4], 8
      %v1687 = vld [vmem:[%s1686] sm:$0xff]
      %v1688 = vld [vmem:[%s1686 + $0x8] sm:$0xff]
      %v1689 = vld [vmem:[%s1686 + $0x10] sm:$0xff]
      %v1690 = vld [vmem:[%s1686 + $0x18] sm:$0xff]
      %v1691 = vld [vmem:[%s1686 + $0x20] sm:$0xff]
      %v1692 = vld [vmem:[%s1686 + $0x28] sm:$0xff]
      %v1693 = vld [vmem:[%s1686 + $0x30] sm:$0xff]
      %v1694 = vld [vmem:[%s1686 + $0x38] sm:$0xff]
      %s1695 = scalar_lea.vmem %s3, 8
      %v1696 = vld [vmem:[%s1695] sm:$0xf]
      %v1697 = vld [vmem:[%s1695 + $0x4] sm:$0x3]
      %v1700 = vunpack.c.l.b16 %v1696
      %v1701 = vunpack.c.l.b16 %v1697
      %v1702 = vpack.c.b16 %v1701, %v1700
      %v1704 = vsel %vm825, %v1687, 0
      %v1707 = vsel %vm825, %v1688, 0
      %v1710 = vsel %vm825, %v1689, 0
      %v1713 = vsel %vm825, %v1690, 0
      %v1716 = vsel %vm825, %v1691, 0
      %v1719 = vsel %vm825, %v1692, 0
      %v1722 = vsel %vm825, %v1693, 0
      %v1725 = vsel %vm825, %v1694, 0
      %v1728 = vsel %vm856, %v1702, 0
      %1730 = vmatprep.subr.bf16.mxu0 0
      %1731 = vmatpush1.bf16.msra.mxu0 %v1728
      %1732 = vmatprep.subr.bf16.mxu0 0
      %1733 = vmatpush1.bf16.msra.mxu0 0
      %1734 = vmatprep.subr.bf16.mxu0 0
      %1735 = vmatpush1.bf16.msra.mxu0 0
      %1736 = vmatprep.subr.bf16.mxu0 0
      %1737 = vmatpush1.bf16.msra.mxu0 0
      %1738 = vmatprep.subr.bf16.mxu0 0
      %1739 = vmatpush1.bf16.msra.mxu0 0
      %1740 = vmatprep.subr.bf16.mxu0 0
      %1741 = vmatpush1.bf16.msra.mxu0 0
      %1742 = vmatprep.subr.bf16.mxu0 0
      %1743 = vmatpush1.bf16.msra.mxu0 0
      %1744 = vmatprep.subr.bf16.mxu0 0
      %1745 = vmatpush1.bf16.msra.mxu0 0
      %1746 = vmatprep.subr.bf16.mxu0 0
      %1747 = vmatpush1.bf16.msra.mxu0 0
      %1748 = vmatprep.subr.bf16.mxu0 0
      %1749 = vmatpush1.bf16.msra.mxu0 0
      %1750 = vmatprep.subr.bf16.mxu0 0
      %1751 = vmatpush1.bf16.msra.mxu0 0
      %1752 = vmatprep.subr.bf16.mxu0 0
      %1753 = vmatpush1.bf16.msra.mxu0 0
      %1754 = vmatprep.subr.bf16.mxu0 0
      %1755 = vmatpush1.bf16.msra.mxu0 0
      %1756 = vmatprep.subr.bf16.mxu0 0
      %1757 = vmatpush1.bf16.msra.mxu0 0
      %1758 = vmatprep.subr.bf16.mxu0 0
      %1759 = vmatpush1.bf16.msra.mxu0 0
      %1760 = vmatprep.subr.bf16.mxu0 0
      %1761 = vmatpush1.bf16.msra.mxu0 0
      %1762 = vmatprep.mubr.bf16.mxu0 0
      %1763 = vmatmul.mubr.bf16.gmra.mrb[0].mxu0 %v1704
      %v1764 = vpop.f32.mrb[0].mxu0
      %v1765 = vadd.f32 0.0, %v1764
      %v1766 = vpop.f32.mrb[0].mxu0
      %v1767 = vpop.f32.mrb[0].mxu0
      %v1768 = vadd.f32 0.0, %v1767
      %v1769 = vpop.f32.mrb[0].mxu0
      %1770 = vmatprep.mubr.bf16.mxu0 0
      %1771 = vmatmul.mubr.bf16.gmra.mrb[0].mxu0 %v1707
      %v1772 = vpop.f32.mrb[0].mxu0
      %v1773 = vadd.f32 0.0, %v1772
      %v1774 = vpop.f32.mrb[0].mxu0
      %v1775 = vpop.f32.mrb[0].mxu0
      %v1776 = vadd.f32 0.0, %v1775
      %v1777 = vpop.f32.mrb[0].mxu0
      %1778 = vmatprep.mubr.bf16.mxu0 0
      %1779 = vmatmul.mubr.bf16.gmra.mrb[0].mxu0 %v1710
      %v1780 = vpop.f32.mrb[0].mxu0
      %v1781 = vadd.f32 0.0, %v1780
      %v1782 = vpop.f32.mrb[0].mxu0
      %v1783 = vpop.f32.mrb[0].mxu0
      %v1784 = vadd.f32 0.0, %v1783
      %v1785 = vpop.f32.mrb[0].mxu0
      %1786 = vmatprep.mubr.bf16.mxu0 0
      %1787 = vmatmul.mubr.bf16.gmra.mrb[0].mxu0 %v1713
      %v1788 = vpop.f32.mrb[0].mxu0
      %v1789 = vadd.f32 0.0, %v1788
      %v1790 = vpop.f32.mrb[0].mxu0
      %v1791 = vpop.f32.mrb[0].mxu0
      %v1792 = vadd.f32 0.0, %v1791
      %v1793 = vpop.f32.mrb[0].mxu0
      %1794 = vmatprep.mubr.bf16.mxu0 0
      %1795 = vmatmul.mubr.bf16.gmra.mrb[0].mxu0 %v1716
      %v1796 = vpop.f32.mrb[0].mxu0
      %v1797 = vadd.f32 0.0, %v1796
      %v1798 = vpop.f32.mrb[0].mxu0
      %v1799 = vpop.f32.mrb[0].mxu0
      %v1800 = vadd.f32 0.0, %v1799
      %v1801 = vpop.f32.mrb[0].mxu0
      %1802 = vmatprep.mubr.bf16.mxu0 0
      %1803 = vmatmul.mubr.bf16.gmra.mrb[0].mxu0 %v1719
      %v1804 = vpop.f32.mrb[0].mxu0
      %v1805 = vadd.f32 0.0, %v1804
      %v1806 = vpop.f32.mrb[0].mxu0
      %v1807 = vpop.f32.mrb[0].mxu0
      %v1808 = vadd.f32 0.0, %v1807
      %v1809 = vpop.f32.mrb[0].mxu0
      %1810 = vmatprep.mubr.bf16.mxu0 0
      %1811 = vmatmul.mubr.bf16.gmra.mrb[0].mxu0 %v1722
      %v1812 = vpop.f32.mrb[0].mxu0
      %v1813 = vadd.f32 0.0, %v1812
      %v1814 = vpop.f32.mrb[0].mxu0
      %v1815 = vpop.f32.mrb[0].mxu0
      %v1816 = vadd.f32 0.0, %v1815
      %v1817 = vpop.f32.mrb[0].mxu0
      %1818 = vmatprep.mubr.bf16.mxu0 0
      %1819 = vmatmul.mubr.bf16.gmra.mrb[0].mxu0 %v1725
      %v1820 = vpop.f32.mrb[0].mxu0
      %v1821 = vadd.f32 0.0, %v1820
      %v1822 = vpop.f32.mrb[0].mxu0
      %v1823 = vpop.f32.mrb[0].mxu0
      %v1824 = vadd.f32 0.0, %v1823
      %v1825 = vpop.f32.mrb[0].mxu0
      %1826 = vdwg.mxu0
      %v1829 = vunpack.c.l.b16 %v1684
      %v1830 = vunpack.c.l.b16 %v1685
      %v1831 = vpack.c.b16 %v1830, %v1829
      %v1833 = vsel %vm825, %v1676, 0
      %v1836 = vsel %vm825, %v1677, 0
      %v1839 = vsel %vm825, %v1678, 0
      %v1842 = vsel %vm825, %v1679, 0
      %v1845 = vsel %vm825, %v1680, 0
      %v1848 = vsel %vm825, %v1681, 0
      %v1851 = vsel %vm825, %v1682, 0
      %v1854 = vsel %vm825, %v1683, 0
      %v1857 = vsel %vm856, %v1831, 0
      %1859 = vmatprep.subr.bf16.mxu0 0
      %1860 = vmatpush1.bf16.msra.mxu0 %v1857
      %1861 = vmatprep.subr.bf16.mxu0 0
      %1862 = vmatpush1.bf16.msra.mxu0 0
      %1863 = vmatprep.subr.bf16.mxu0 0
      %1864 = vmatpush1.bf16.msra.mxu0 0
      %1865 = vmatprep.subr.bf16.mxu0 0
      %1866 = vmatpush1.bf16.msra.mxu0 0
      %1867 = vmatprep.subr.bf16.mxu0 0
      %1868 = vmatpush1.bf16.msra.mxu0 0
      %1869 = vmatprep.subr.bf16.mxu0 0
      %1870 = vmatpush1.bf16.msra.mxu0 0
      %1871 = vmatprep.subr.bf16.mxu0 0
      %1872 = vmatpush1.bf16.msra.mxu0 0
      %1873 = vmatprep.subr.bf16.mxu0 0
      %1874 = vmatpush1.bf16.msra.mxu0 0
      %1875 = vmatprep.subr.bf16.mxu0 0
      %1876 = vmatpush1.bf16.msra.mxu0 0
      %1877 = vmatprep.subr.bf16.mxu0 0
      %1878 = vmatpush1.bf16.msra.mxu0 0
      %1879 = vmatprep.subr.bf16.mxu0 0
      %1880 = vmatpush1.bf16.msra.mxu0 0
      %1881 = vmatprep.subr.bf16.mxu0 0
      %1882 = vmatpush1.bf16.msra.mxu0 0
      %1883 = vmatprep.subr.bf16.mxu0 0
      %1884 = vmatpush1.bf16.msra.mxu0 0
      %1885 = vmatprep.subr.bf16.mxu0 0
      %1886 = vmatpush1.bf16.msra.mxu0 0
      %1887 = vmatprep.subr.bf16.mxu0 0
      %1888 = vmatpush1.bf16.msra.mxu0 0
      %1889 = vmatprep.subr.bf16.mxu0 0
      %1890 = vmatpush1.bf16.msra.mxu0 0
      %1891 = vmatprep.mubr.bf16.mxu0 0
      %1892 = vmatmul.mubr.bf16.gmra.mrb[0].mxu0 %v1833
      %v1893 = vpop.f32.mrb[0].mxu0
      %v1894 = vadd.f32 %v1765, %v1893
      %v1895 = vpop.f32.mrb[0].mxu0
      %v1896 = vpop.f32.mrb[0].mxu0
      %v1897 = vadd.f32 %v1768, %v1896
      %v1898 = vpop.f32.mrb[0].mxu0
      %1899 = vmatprep.mubr.bf16.mxu0 0
      %1900 = vmatmul.mubr.bf16.gmra.mrb[0].mxu0 %v1836
      %v1901 = vpop.f32.mrb[0].mxu0
      %v1902 = vadd.f32 %v1773, %v1901
      %v1903 = vpop.f32.mrb[0].mxu0
      %v1904 = vpop.f32.mrb[0].mxu0
      %v1905 = vadd.f32 %v1776, %v1904
      %v1906 = vpop.f32.mrb[0].mxu0
      %1907 = vmatprep.mubr.bf16.mxu0 0
      %1908 = vmatmul.mubr.bf16.gmra.mrb[0].mxu0 %v1839
      %v1909 = vpop.f32.mrb[0].mxu0
      %v1910 = vadd.f32 %v1781, %v1909
      %v1911 = vpop.f32.mrb[0].mxu0
      %v1912 = vpop.f32.mrb[0].mxu0
      %v1913 = vadd.f32 %v1784, %v1912
      %v1914 = vpop.f32.mrb[0].mxu0
      %1915 = vmatprep.mubr.bf16.mxu0 0
      %1916 = vmatmul.mubr.bf16.gmra.mrb[0].mxu0 %v1842
      %v1917 = vpop.f32.mrb[0].mxu0
      %v1918 = vadd.f32 %v1789, %v1917
      %v1919 = vpop.f32.mrb[0].mxu0
      %v1920 = vpop.f32.mrb[0].mxu0
      %v1921 = vadd.f32 %v1792, %v1920
      %v1922 = vpop.f32.mrb[0].mxu0
      %1923 = vmatprep.mubr.bf16.mxu0 0
      %1924 = vmatmul.mubr.bf16.gmra.mrb[0].mxu0 %v1845
      %v1925 = vpop.f32.mrb[0].mxu0
      %v1926 = vadd.f32 %v1797, %v1925
      %v1927 = vpop.f32.mrb[0].mxu0
      %v1928 = vpop.f32.mrb[0].mxu0
      %v1929 = vadd.f32 %v1800, %v1928
      %v1930 = vpop.f32.mrb[0].mxu0
      %1931 = vmatprep.mubr.bf16.mxu0 0
      %1932 = vmatmul.mubr.bf16.gmra.mrb[0].mxu0 %v1848
      %v1933 = vpop.f32.mrb[0].mxu0
      %v1934 = vadd.f32 %v1805, %v1933
      %v1935 = vpop.f32.mrb[0].mxu0
      %v1936 = vpop.f32.mrb[0].mxu0
      %v1937 = vadd.f32 %v1808, %v1936
      %v1938 = vpop.f32.mrb[0].mxu0
      %1939 = vmatprep.mubr.bf16.mxu0 0
      %1940 = vmatmul.mubr.bf16.gmra.mrb[0].mxu0 %v1851
      %v1941 = vpop.f32.mrb[0].mxu0
      %v1942 = vadd.f32 %v1813, %v1941
      %v1943 = vpop.f32.mrb[0].mxu0
      %v1944 = vpop.f32.mrb[0].mxu0
      %v1945 = vadd.f32 %v1816, %v1944
      %v1946 = vpop.f32.mrb[0].mxu0
      %1947 = vmatprep.mubr.bf16.mxu0 0
      %1948 = vmatmul.mubr.bf16.gmra.mrb[0].mxu0 %v1854
      %v1949 = vpop.f32.mrb[0].mxu0
      %v1950 = vadd.f32 %v1821, %v1949
      %v1951 = vpop.f32.mrb[0].mxu0
      %v1952 = vpop.f32.mrb[0].mxu0
      %v1953 = vadd.f32 %v1824, %v1952
      %v1954 = vpop.f32.mrb[0].mxu0
      %1955 = vdwg.mxu0
      %s1956 = scalar_lea.vmem [#allocation4], 16
      %v1957 = vld [vmem:[%s1956] sm:$0xff]
      %v1958 = vld [vmem:[%s1956 + $0x8] sm:$0xff]
      %v1959 = vld [vmem:[%s1956 + $0x10] sm:$0xff]
      %v1960 = vld [vmem:[%s1956 + $0x18] sm:$0xff]
      %v1961 = vld [vmem:[%s1956 + $0x20] sm:$0xff]
      %v1962 = vld [vmem:[%s1956 + $0x28] sm:$0xff]
      %v1963 = vld [vmem:[%s1956 + $0x30] sm:$0xff]
      %v1964 = vld [vmem:[%s1956 + $0x38] sm:$0xff]
      %s1965 = scalar_lea.vmem %s3, 16
      %v1966 = vld [vmem:[%s1965] sm:$0xf]
      %v1967 = vld [vmem:[%s1965 + $0x4] sm:$0x3]
      %v1970 = vunpack.c.l.b16 %v1966
      %v1971 = vunpack.c.l.b16 %v1967
      %v1972 = vpack.c.b16 %v1971, %v1970
      %v1974 = vsel %vm825, %v1957, 0
      %v1977 = vsel %vm825, %v1958, 0
      %v1980 = vsel %vm825, %v1959, 0
      %v1983 = vsel %vm825, %v1960, 0
      %v1986 = vsel %vm825, %v1961, 0
      %v1989 = vsel %vm825, %v1962, 0
      %v1992 = vsel %vm825, %v1963, 0
      %v1995 = vsel %vm825, %v1964, 0
      %v1998 = vsel %vm856, %v1972, 0
      %2000 = vmatprep.subr.bf16.mxu0 0
      %2001 = vmatpush1.bf16.msra.mxu0 %v1998
      %2002 = vmatprep.subr.bf16.mxu0 0
      %2003 = vmatpush1.bf16.msra.mxu0 0
      %2004 = vmatprep.subr.bf16.mxu0 0
      %2005 = vmatpush1.bf16.msra.mxu0 0
      %2006 = vmatprep.subr.bf16.mxu0 0
      %2007 = vmatpush1.bf16.msra.mxu0 0
      %2008 = vmatprep.subr.bf16.mxu0 0
      %2009 = vmatpush1.bf16.msra.mxu0 0
      %2010 = vmatprep.subr.bf16.mxu0 0
      %2011 = vmatpush1.bf16.msra.mxu0 0
      %2012 = vmatprep.subr.bf16.mxu0 0
      %2013 = vmatpush1.bf16.msra.mxu0 0
      %2014 = vmatprep.subr.bf16.mxu0 0
      %2015 = vmatpush1.bf16.msra.mxu0 0
      %2016 = vmatprep.subr.bf16.mxu0 0
      %2017 = vmatpush1.bf16.msra.mxu0 0
      %2018 = vmatprep.subr.bf16.mxu0 0
      %2019 = vmatpush1.bf16.msra.mxu0 0
      %2020 = vmatprep.subr.bf16.mxu0 0
      %2021 = vmatpush1.bf16.msra.mxu0 0
      %2022 = vmatprep.subr.bf16.mxu0 0
      %2023 = vmatpush1.bf16.msra.mxu0 0
      %2024 = vmatprep.subr.bf16.mxu0 0
      %2025 = vmatpush1.bf16.msra.mxu0 0
      %2026 = vmatprep.subr.bf16.mxu0 0
      %2027 = vmatpush1.bf16.msra.mxu0 0
      %2028 = vmatprep.subr.bf16.mxu0 0
      %2029 = vmatpush1.bf16.msra.mxu0 0
      %2030 = vmatprep.subr.bf16.mxu0 0
      %2031 = vmatpush1.bf16.msra.mxu0 0
      %2032 = vmatprep.mubr.bf16.mxu0 0
      %2033 = vmatmul.mubr.bf16.gmra.mrb[0].mxu0 %v1974
      %v2034 = vpop.f32.mrb[0].mxu0
      %v2035 = vadd.f32 0.0, %v2034
      %v2036 = vpop.f32.mrb[0].mxu0
      %v2037 = vpop.f32.mrb[0].mxu0
      %v2038 = vadd.f32 0.0, %v2037
      %v2039 = vpop.f32.mrb[0].mxu0
      %2040 = vmatprep.mubr.bf16.mxu0 0
      %2041 = vmatmul.mubr.bf16.gmra.mrb[0].mxu0 %v1977
      %v2042 = vpop.f32.mrb[0].mxu0
      %v2043 = vadd.f32 0.0, %v2042
      %v2044 = vpop.f32.mrb[0].mxu0
      %v2045 = vpop.f32.mrb[0].mxu0
      %v2046 = vadd.f32 0.0, %v2045
      %v2047 = vpop.f32.mrb[0].mxu0
      %2048 = vmatprep.mubr.bf16.mxu0 0
      %2049 = vmatmul.mubr.bf16.gmra.mrb[0].mxu0 %v1980
      %v2050 = vpop.f32.mrb[0].mxu0
      %v2051 = vadd.f32 0.0, %v2050
      %v2052 = vpop.f32.mrb[0].mxu0
      %v2053 = vpop.f32.mrb[0].mxu0
      %v2054 = vadd.f32 0.0, %v2053
      %v2055 = vpop.f32.mrb[0].mxu0
      %2056 = vmatprep.mubr.bf16.mxu0 0
      %2057 = vmatmul.mubr.bf16.gmra.mrb[0].mxu0 %v1983
      %v2058 = vpop.f32.mrb[0].mxu0
      %v2059 = vadd.f32 0.0, %v2058
      %v2060 = vpop.f32.mrb[0].mxu0
      %v2061 = vpop.f32.mrb[0].mxu0
      %v2062 = vadd.f32 0.0, %v2061
      %v2063 = vpop.f32.mrb[0].mxu0
      %2064 = vmatprep.mubr.bf16.mxu0 0
      %2065 = vmatmul.mubr.bf16.gmra.mrb[0].mxu0 %v1986
      %v2066 = vpop.f32.mrb[0].mxu0
      %v2067 = vadd.f32 0.0, %v2066
      %v2068 = vpop.f32.mrb[0].mxu0
      %v2069 = vpop.f32.mrb[0].mxu0
      %v2070 = vadd.f32 0.0, %v2069
      %v2071 = vpop.f32.mrb[0].mxu0
      %2072 = vmatprep.mubr.bf16.mxu0 0
      %2073 = vmatmul.mubr.bf16.gmra.mrb[0].mxu0 %v1989
      %v2074 = vpop.f32.mrb[0].mxu0
      %v2075 = vadd.f32 0.0, %v2074
      %v2076 = vpop.f32.mrb[0].mxu0
      %v2077 = vpop.f32.mrb[0].mxu0
      %v2078 = vadd.f32 0.0, %v2077
      %v2079 = vpop.f32.mrb[0].mxu0
      %2080 = vmatprep.mubr.bf16.mxu0 0
      %2081 = vmatmul.mubr.bf16.gmra.mrb[0].mxu0 %v1992
      %v2082 = vpop.f32.mrb[0].mxu0
      %v2083 = vadd.f32 0.0, %v2082
      %v2084 = vpop.f32.mrb[0].mxu0
      %v2085 = vpop.f32.mrb[0].mxu0
      %v2086 = vadd.f32 0.0, %v2085
      %v2087 = vpop.f32.mrb[0].mxu0
      %2088 = vmatprep.mubr.bf16.mxu0 0
      %2089 = vmatmul.mubr.bf16.gmra.mrb[0].mxu0 %v1995
      %v2090 = vpop.f32.mrb[0].mxu0
      %v2091 = vadd.f32 0.0, %v2090
      %v2092 = vpop.f32.mrb[0].mxu0
      %v2093 = vpop.f32.mrb[0].mxu0
      %v2094 = vadd.f32 0.0, %v2093
      %v2095 = vpop.f32.mrb[0].mxu0
      %2096 = vdwg.mxu0
      %v2097 = vadd.f32 %v1894, %v2035
      %v2098 = vadd.f32 %v1897, %v2038
      %v2099 = vadd.f32 %v1902, %v2043
      %v2100 = vadd.f32 %v1905, %v2046
      %v2101 = vadd.f32 %v1910, %v2051
      %v2102 = vadd.f32 %v1913, %v2054
      %v2103 = vadd.f32 %v1918, %v2059
      %v2104 = vadd.f32 %v1921, %v2062
      %v2105 = vadd.f32 %v1926, %v2067
      %v2106 = vadd.f32 %v1929, %v2070
      %v2107 = vadd.f32 %v1934, %v2075
      %v2108 = vadd.f32 %v1937, %v2078
      %v2109 = vadd.f32 %v1942, %v2083
      %v2110 = vadd.f32 %v1945, %v2086
      %v2111 = vadd.f32 %v1950, %v2091
      %v2112 = vadd.f32 %v1953, %v2094
      %s2113 = sadd.s32 %s251, 2
      %s2114 = smul.addr %s2113, 8
      %s2115 = scalar_lea.vmem [#allocation2], %s2114
      %v2116 = vld [vmem:[%s2115] sm:$0xff]
      %v2117 = vld [vmem:[%s2115 + $0x8] sm:$0xff]
      %v2118 = vld [vmem:[%s2115 + $0x10] sm:$0xff]
      %v2119 = vld [vmem:[%s2115 + $0x18] sm:$0xff]
      %v2120 = vld [vmem:[%s2115 + $0x20] sm:$0xff]
      %v2121 = vld [vmem:[%s2115 + $0x28] sm:$0xff]
      %v2122 = vld [vmem:[%s2115 + $0x30] sm:$0xff]
      %v2123 = vld [vmem:[%s2115 + $0x38] sm:$0xff]
      %v2124 = vunpack.c.l.bf16 %v2116
      %v2125 = vunpack.c.h.bf16 %v2116
      %v2126 = vunpack.c.l.bf16 %v2117
      %v2127 = vunpack.c.h.bf16 %v2117
      %v2128 = vunpack.c.l.bf16 %v2118
      %v2129 = vunpack.c.h.bf16 %v2118
      %v2130 = vunpack.c.l.bf16 %v2119
      %v2131 = vunpack.c.h.bf16 %v2119
      %v2132 = vunpack.c.l.bf16 %v2120
      %v2133 = vunpack.c.h.bf16 %v2120
      %v2134 = vunpack.c.l.bf16 %v2121
      %v2135 = vunpack.c.h.bf16 %v2121
      %v2136 = vunpack.c.l.bf16 %v2122
      %v2137 = vunpack.c.h.bf16 %v2122
      %v2138 = vunpack.c.l.bf16 %v2123
      %v2139 = vunpack.c.h.bf16 %v2123
      %v2140 = vld [vmem:[%s4] sm:$0x1]
      %v2142 = vlaneseq
      %v2143 = vshrl.u32 %v2142, 7
      %v2144 = vsub.s32 0, %v2143
      %v2145 = vrot.slane %v2140, %v2144
      %v2147 = vadd.f32 %v2097, %v2145
      %v2148 = vadd.f32 %v2098, %v2145
      %v2149 = vadd.f32 %v2099, %v2145
      %v2150 = vadd.f32 %v2100, %v2145
      %v2151 = vadd.f32 %v2101, %v2145
      %v2152 = vadd.f32 %v2102, %v2145
      %v2153 = vadd.f32 %v2103, %v2145
      %v2154 = vadd.f32 %v2104, %v2145
      %v2155 = vadd.f32 %v2105, %v2145
      %v2156 = vadd.f32 %v2106, %v2145
      %v2157 = vadd.f32 %v2107, %v2145
      %v2158 = vadd.f32 %v2108, %v2145
      %v2159 = vadd.f32 %v2109, %v2145
      %v2160 = vadd.f32 %v2110, %v2145
      %v2161 = vadd.f32 %v2111, %v2145
      %v2162 = vadd.f32 %v2112, %v2145
      %v2163 = vadd.f32 %v2147, %v2124
      %v2164 = vadd.f32 %v2148, %v2125
      %v2165 = vadd.f32 %v2149, %v2126
      %v2166 = vadd.f32 %v2150, %v2127
      %v2167 = vadd.f32 %v2151, %v2128
      %v2168 = vadd.f32 %v2152, %v2129
      %v2169 = vadd.f32 %v2153, %v2130
      %v2170 = vadd.f32 %v2154, %v2131
      %v2171 = vadd.f32 %v2155, %v2132
      %v2172 = vadd.f32 %v2156, %v2133
      %v2173 = vadd.f32 %v2157, %v2134
      %v2174 = vadd.f32 %v2158, %v2135
      %v2175 = vadd.f32 %v2159, %v2136
      %v2176 = vadd.f32 %v2160, %v2137
      %v2177 = vadd.f32 %v2161, %v2138
      %v2178 = vadd.f32 %v2162, %v2139
      %v2179 = vmax.f32 %v2163, 0.0
      %v2180 = vmax.f32 %v2164, 0.0
      %v2181 = vmax.f32 %v2165, 0.0
      %v2182 = vmax.f32 %v2166, 0.0
      %v2183 = vmax.f32 %v2167, 0.0
      %v2184 = vmax.f32 %v2168, 0.0
      %v2185 = vmax.f32 %v2169, 0.0
      %v2186 = vmax.f32 %v2170, 0.0
      %v2187 = vmax.f32 %v2171, 0.0
      %v2188 = vmax.f32 %v2172, 0.0
      %v2189 = vmax.f32 %v2173, 0.0
      %v2190 = vmax.f32 %v2174, 0.0
      %v2191 = vmax.f32 %v2175, 0.0
      %v2192 = vmax.f32 %v2176, 0.0
      %v2193 = vmax.f32 %v2177, 0.0
      %v2194 = vmax.f32 %v2178, 0.0
      %v2195 = vpack.c.bf16 %v2180, %v2179
      %v2196 = vpack.c.bf16 %v2182, %v2181
      %v2197 = vpack.c.bf16 %v2184, %v2183
      %v2198 = vpack.c.bf16 %v2186, %v2185
      %v2199 = vpack.c.bf16 %v2188, %v2187
      %v2200 = vpack.c.bf16 %v2190, %v2189
      %v2201 = vpack.c.bf16 %v2192, %v2191
      %v2202 = vpack.c.bf16 %v2194, %v2193
      %v2211 = vunpack.c.l.b16 %v2195
      %v2212 = vunpack.c.h.b16 %v2195
      %v2213 = vunpack.c.l.b16 %v2196
      %v2214 = vunpack.c.h.b16 %v2196
      %v2215 = vunpack.c.l.b16 %v2197
      %v2216 = vunpack.c.h.b16 %v2197
      %v2217 = vunpack.c.l.b16 %v2198
      %v2218 = vunpack.c.h.b16 %v2198
      %v2219 = vunpack.c.l.b16 %v2199
      %v2220 = vunpack.c.h.b16 %v2199
      %v2221 = vunpack.c.l.b16 %v2200
      %v2222 = vunpack.c.h.b16 %v2200
      %v2223 = vunpack.c.l.b16 %v2201
      %v2224 = vunpack.c.h.b16 %v2201
      %v2225 = vunpack.c.l.b16 %v2202
      %v2226 = vunpack.c.h.b16 %v2202
      %v2227 = vpack.c.b16 %v2211, %v2211
      %v2228 = vpack.c.b16 %v2212, %v2212
      %v2229 = vpack.c.b16 %v2213, %v2213
      %v2230 = vpack.c.b16 %v2214, %v2214
      %v2231 = vpack.c.b16 %v2215, %v2215
      %v2232 = vpack.c.b16 %v2216, %v2216
      %v2233 = vpack.c.b16 %v2217, %v2217
      %v2234 = vpack.c.b16 %v2218, %v2218
      %v2235 = vpack.c.b16 %v2219, %v2219
      %v2236 = vpack.c.b16 %v2220, %v2220
      %v2237 = vpack.c.b16 %v2221, %v2221
      %v2238 = vpack.c.b16 %v2222, %v2222
      %v2239 = vpack.c.b16 %v2223, %v2223
      %v2240 = vpack.c.b16 %v2224, %v2224
      %v2241 = vpack.c.b16 %v2225, %v2225
      %v2242 = vpack.c.b16 %v2226, %v2226
      %vm2259 = vcmask 27648
      %2260 = vst.msk [vmem:[%s248] sm:$0xf] %vm2259, %v2227
      %2261 = vst.msk [vmem:[%s248 + $0x4] sm:$0xf] %vm2259, %v2228
      %2262 = vst.msk [vmem:[%s248 + $0x8] sm:$0xf] %vm2259, %v2229
      %2263 = vst.msk [vmem:[%s248 + $0xc] sm:$0xf] %vm2259, %v2230
      %2264 = vst.msk [vmem:[%s248 + $0x10] sm:$0xf] %vm2259, %v2231
      %2265 = vst.msk [vmem:[%s248 + $0x14] sm:$0xf] %vm2259, %v2232
      %2266 = vst.msk [vmem:[%s248 + $0x18] sm:$0xf] %vm2259, %v2233
      %2267 = vst.msk [vmem:[%s248 + $0x1c] sm:$0xf] %vm2259, %v2234
      %2268 = vst.msk [vmem:[%s248 + $0x20] sm:$0xf] %vm2259, %v2235
      %2269 = vst.msk [vmem:[%s248 + $0x24] sm:$0xf] %vm2259, %v2236
      %2270 = vst.msk [vmem:[%s248 + $0x28] sm:$0xf] %vm2259, %v2237
      %2271 = vst.msk [vmem:[%s248 + $0x2c] sm:$0xf] %vm2259, %v2238
      %2272 = vst.msk [vmem:[%s248 + $0x30] sm:$0xf] %vm2259, %v2239
      %2273 = vst.msk [vmem:[%s248 + $0x34] sm:$0xf] %vm2259, %v2240
      %2274 = vst.msk [vmem:[%s248 + $0x38] sm:$0xf] %vm2259, %v2241
      %2275 = vst.msk [vmem:[%s248 + $0x3c] sm:$0xf] %vm2259, %v2242
      %s2276 = smul.u32 8, %s21
      %p2277 = scmp.lt.s32.totalorder %s20, 1
      %s2278 = scalar_select %p2277, %s20, 1
      %p2279 = scmp.lt.s32.totalorder %s2276, 15
      %s2280 = scalar_select %p2279, %s2276, 15
      %s2281 = smul.addr %s2280, 2
      %s2282 = smul.addr %s2278, 32
      %s2283 = sadd.s32 %s2281, %s2282
      %s2284 = smul.addr %s2283, 4
      %s2285 = scalar_lea.vmem %s5, %s2284
      // Predicated region
      $region53: #{basic_block_forward.1} parent=39 // pred_check
        %p2286 = pneg %p158
      $region54: #{basic_block_forward.1} parent=39 // pred_check_branch
        %2288 = sbr.rel (%p2286) target = $region56
      $region55: #{basic_block_forward.1} parent=39 // pred_region
        %s2289 = smul.u32 8, %s21
      $region56: #{basic_block_forward.1} parent=39 // pred_fallthru
        _
    $region40: #{basic_block_forward.1} parent=5 // pred_fallthru
      _
    %p2290 = scmp.le.s32.totalorder 2, %s11
    // Predicated region
    $region57: #{basic_block_forward.1} parent=5 // pred_check
      %p2291 = pneg %p2290
    $region58: #{basic_block_forward.1} parent=5 // pred_check_branch
      %2293 = sbr.rel (%p2291) target = $region60
    $region59: #{basic_block_forward.1} parent=5 // pred_region
      %s2294 = ssub.s32 %s11, 2
      // Predicated region
      $region61: #{basic_block_forward.1} parent=59 // pred_check
        %p2295 = pneg %p164
      $region62: #{basic_block_forward.1} parent=59 // pred_check_branch
        %2297 = sbr.rel (%p2295) target = $region64
      $region63: #{basic_block_forward.1} parent=59 // pred_region
        %s2298 = smul.u32 8, %s23
        %p2299 = scmp.lt.s32.totalorder %s22, 1
        %s2300 = scalar_select %p2299, %s22, 1
        %p2301 = scmp.lt.s32.totalorder %s2298, 15
        %s2302 = scalar_select %p2301, %s2298, 15
        %s2303 = smul.addr %s2302, 2
        %s2304 = smul.addr %s2300, 32
        %s2305 = sadd.s32 %s2303, %s2304
        %s2306 = smul.addr %s2305, 4
        %s2307 = scalar_lea.vmem %s5, %s2306
      $region64: #{basic_block_forward.1} parent=59 // pred_fallthru
        _
    $region60: #{basic_block_forward.1} parent=5 // pred_fallthru
      _
  $region6: #{basic_block_forward.1} parent=0 // loop_footer
    %s15 = sadd.s32 1, %s11
  $region7: #{basic_block_forward.1} parent=0 // loop_footer_branch
    %10 = sbr.rel target = $region3
  $region8: #{basic_block_forward.1} parent=0 // loop_exit
    _

</llo_original>
